<compile_context>
chip_gen: v7x
topology: tpu7x:2x2x1
jax: 0.10.0
libtpu: 0.0.40
codegen_flags: <defaults>
</compile_context>

<pallas_src>
import numpy as np
import jax
import jax.numpy as jnp
from jax import lax
from jax.experimental import pallas as pl
from jax.experimental.pallas import tpu as pltpu


def _bilinear_matrix(n_in: int, scale: float) -> np.ndarray:
    """Row matrix M (n_out, n_in) with y = M @ x reproducing
    torch.nn.functional.interpolate(mode='bilinear', align_corners=False)
    along one spatial axis (half-pixel centers, negative coords clamped).
    Every row sums to 1 (this is what lets the 1x1 conv + bias commute with
    the upsample)."""
    n_out = int(n_in * scale)
    inv_scale = 1.0 / scale
    m = np.zeros((n_out, n_in), dtype=np.float32)
    for i in range(n_out):
        src = max((i + 0.5) * inv_scale - 0.5, 0.0)
        i0 = min(int(np.floor(src)), n_in - 1)
        i1 = min(i0 + 1, n_in - 1)
        w1 = src - i0
        m[i, i0] += 1.0 - w1
        m[i, i1] += w1
    return m


def _upsample_conv_kernel(x_ref, wh_ref, wwt_ref, wc_ref, b_ref, o_ref,
                          zflat_ref, z3_ref):
    # x_ref:   (1, C, H*W)    full input-channel slab, spatial flattened on lanes
    # wh_ref:  (H2, H)        row-interp matrix
    # wwt_ref: (W, W2)        col-interp matrix, transposed
    # wc_ref:  (TC, C)        1x1 conv weight tile [out, in]   (VMEM)
    # b_ref:   (TC, 1)        conv bias tile                   (VMEM)
    # o_ref:   (1, TC, H2, W2)
    # zflat_ref: (TC, H*W)    VMEM scratch (conv output, flat spatial)
    # z3_ref:    (TC, H, W)   VMEM scratch (conv output, unflattened)
    TC = o_ref.shape[1]
    H2, H = wh_ref.shape
    W, W2 = wwt_ref.shape

    # ---- 1x1 conv over channels BEFORE the upsample: one MXU matmul ----
    z = jnp.dot(wc_ref[...], x_ref[0],
                preferred_element_type=jnp.float32) + b_ref[...]        # (TC, H*W)
    zflat_ref[...] = z

    # ---- un-flatten the spatial lane dim (H*W) -> (H, W) ----
    # Done with H static row copies through VMEM instead of a lane-splitting
    # value reshape (keeps lowering to plain loads/stores).
    # TODO(synk): at production H this relayout would be cheaper as a single
    #             sublane-strided store (or the conv emitting row blocks).
    for h in range(H):
        z3_ref[:, h, :] = zflat_ref[:, h * W:(h + 1) * W]
    z3 = z3_ref[...]                                                     # (TC, H, W)

    # ---- column (W) pass, folded over (channel, row): one MXU matmul ----
    u = jnp.dot(z3.reshape(TC * H, W), wwt_ref[...],
                preferred_element_type=jnp.float32)                      # (TC*H, W2)
    u3 = u.reshape(TC, H, W2)

    # ---- row (H) pass: batched matmul over the channel tile ----
    wh_b = jnp.broadcast_to(wh_ref[...], (TC, H2, H))
    y = lax.dot_general(wh_b, u3, (((2,), (1,)), ((0,), (0,))),
                        preferred_element_type=jnp.float32)              # (TC, H2, W2)

    # TODO(synk): for W2 < 128 (small images) a lane-dense (TC, H2*W2) output
    #             layout would avoid masked partial stores; at production
    #             sizes W2 >= 128 the stores are already lane-dense.
    o_ref[0] = y.astype(o_ref.dtype)


def _upsample_kernel(x_ref, wh_ref, wwt_ref, o_ref):
    # x_ref: (1, TC, H, W); o_ref: (1, TC, H2, W2)
    TC = o_ref.shape[1]
    H2, H = wh_ref.shape
    W, W2 = wwt_ref.shape

    x3 = x_ref[0]                                                        # (TC, H, W)
    u = jnp.dot(x3.reshape(TC * H, W), wwt_ref[...],
                preferred_element_type=jnp.float32)                      # (TC*H, W2)
    u3 = u.reshape(TC, H, W2)
    wh_b = jnp.broadcast_to(wh_ref[...], (TC, H2, H))
    y = lax.dot_general(wh_b, u3, (((2,), (1,)), ((0,), (0,))),
                        preferred_element_type=jnp.float32)              # (TC, H2, W2)
    o_ref[0] = y.astype(o_ref.dtype)


def _pick_channel_tile(c: int, cap: int = 64) -> int:
    """Largest multiple-of-8 divisor of c that is <= cap (or c itself when small)."""
    if c <= cap:
        return c
    for d in range(cap, 7, -8):
        if c % d == 0:
            return d
    return c


def upsample(x, conv_w=None, conv_b=None, *, with_conv=True, channel_tile=None):
    """Pallas equivalent of Upsample.forward. x: (B, C, H, W) float32 (NCHW)."""
    B, C, H, W = x.shape
    H2, W2 = 2 * H, 2 * W
    wh = jnp.asarray(_bilinear_matrix(H, 2.0))        # (H2, H)
    wwt = jnp.asarray(_bilinear_matrix(W, 2.0)).T     # (W, W2)

    TC = channel_tile if channel_tile is not None else _pick_channel_tile(C)
    assert C % TC == 0
    nct = C // TC

    out_shape = jax.ShapeDtypeStruct((B, C, H2, W2), x.dtype)
    out_spec = pl.BlockSpec((1, TC, H2, W2), lambda b, ct: (b, ct, 0, 0))
    cparams = pltpu.CompilerParams(
        dimension_semantics=("parallel", "parallel"),
        vmem_limit_bytes=64 * 1024 * 1024)

    if with_conv:
        x_flat = x.reshape(B, C, H * W)               # free, contiguous NCHW reshape
        wc = conv_w.reshape(C, C).astype(jnp.float32)  # (out, in) from (out, in, 1, 1)
        bb = conv_b.astype(jnp.float32).reshape(C, 1)
        grid_spec = pltpu.PrefetchScalarGridSpec(
            num_scalar_prefetch=0,
            grid=(B, nct),
            in_specs=[
                # full input-channel slab; index map ignores ct -> no re-DMA
                pl.BlockSpec((1, C, H * W), lambda b, ct: (b, 0, 0)),
                pl.BlockSpec((H2, H), lambda b, ct: (0, 0)),
                pl.BlockSpec((W, W2), lambda b, ct: (0, 0)),
                pl.BlockSpec((TC, C), lambda b, ct: (ct, 0)),
                pl.BlockSpec((TC, 1), lambda b, ct: (ct, 0)),
            ],
            out_specs=out_spec,
            scratch_shapes=[
                pltpu.VMEM((TC, H * W), jnp.float32),
                pltpu.VMEM((TC, H, W), jnp.float32),
            ])
        return pl.pallas_call(
            _upsample_conv_kernel,
            out_shape=out_shape,
            grid_spec=grid_spec,
            compiler_params=cparams,
        )(x_flat, wh, wwt, wc, bb)

    grid_spec = pltpu.PrefetchScalarGridSpec(
        num_scalar_prefetch=0,
        grid=(B, nct),
        in_specs=[
            pl.BlockSpec((1, TC, H, W), lambda b, ct: (b, ct, 0, 0)),
            pl.BlockSpec((H2, H), lambda b, ct: (0, 0)),
            pl.BlockSpec((W, W2), lambda b, ct: (0, 0)),
        ],
        out_specs=out_spec)
    return pl.pallas_call(
        _upsample_kernel,
        out_shape=out_shape,
        grid_spec=grid_spec,
        compiler_params=cparams,
    )(x, wh, wwt)


if __name__ == "__main__":
    B, C, H, W = 2, 4, 16, 16
    key = jax.random.PRNGKey(0)
    kx, kw, kb = jax.random.split(key, 3)
    x = jax.random.normal(kx, (B, C, H, W), dtype=jnp.float32)
    # Deterministic synthetic Conv2d(C, C, kernel_size=1) parameters.
    conv_w = jax.random.normal(kw, (C, C, 1, 1), dtype=jnp.float32) / np.sqrt(C)
    conv_b = 0.1 * jax.random.normal(kb, (C,), dtype=jnp.float32)

    out = jax.block_until_ready(upsample(x, conv_w, conv_b, with_conv=True))
    out_noconv = jax.block_until_ready(upsample(x, with_conv=False))

    # Plain-JAX reference (same PyTorch-exact interpolation matrices), applied
    # in the original module order: upsample, then conv.
    wh = jnp.asarray(_bilinear_matrix(H, 2.0))        # (H2, H)
    ww = jnp.asarray(_bilinear_matrix(W, 2.0))        # (W2, W)
    ref = jnp.einsum("ih,nchw->nciw", wh, x)
    ref = jnp.einsum("jw,nciw->ncij", ww, ref)
    assert out_noconv.shape == (B, C, 2 * H, 2 * W)
    assert np.allclose(np.asarray(out_noconv), np.asarray(ref), atol=2e-3, rtol=2e-3)

    ref_c = jnp.einsum("oc,ncij->noij", conv_w.reshape(C, C), ref) \
        + conv_b[None, :, None, None]
    assert out.shape == (B, C, 2 * H, 2 * W)
    assert np.allclose(np.asarray(out), np.asarray(ref_c), atol=2e-3, rtol=2e-3)

    print("KERNEL_OK")
</pallas_src>

<mosaic_0001>
module attributes {stable_mosaic.version = 11 : i64} {
  func.func @_upsample_conv_kernel(%arg0: i32, %arg1: i32, %arg2: memref<1x4x256xf32, #tpu.memory_space<vmem>>, %arg3: memref<32x16xf32, #tpu.memory_space<vmem>>, %arg4: memref<16x32xf32, #tpu.memory_space<vmem>>, %arg5: memref<4x4xf32, #tpu.memory_space<vmem>>, %arg6: memref<4x1xf32, #tpu.memory_space<vmem>>, %arg7: memref<1x4x32x32xf32, #tpu.memory_space<vmem>>, %arg8: memref<4x256xf32, #tpu.memory_space<vmem>>, %arg9: memref<4x16x16xf32, #tpu.memory_space<vmem>>) attributes {dimension_semantics = [#tpu.dimension_semantics<parallel>, #tpu.dimension_semantics<parallel>], iteration_bounds = array<i64: 2, 1>, scalar_prefetch = 0 : i64, scratch_operands = 2 : i64, tpu.core_type = #tpu.core_type<tc>, window_params = [{transform_indices = @transform_0, window_bounds = array<i64: 1, 4, 256>}, {pipeline_mode = #tpu.pipeline_mode<synchronous>, transform_indices = @transform_1, window_bounds = array<i64: 32, 16>}, {pipeline_mode = #tpu.pipeline_mode<synchronous>, transform_indices = @transform_2, window_bounds = array<i64: 16, 32>}, {transform_indices = @transform_3, window_bounds = array<i64: 4, 4>}, {transform_indices = @transform_4, window_bounds = array<i64: 4, 1>}, {transform_indices = @transform_5, window_bounds = array<i64: 1, 4, 32, 32>}]} {
    %c0 = arith.constant 0 : index
    %c0_0 = arith.constant 0 : index
    %0 = vector.load %arg5[%c0, %c0_0] : memref<4x4xf32, #tpu.memory_space<vmem>>, vector<4x4xf32>
    %c0_1 = arith.constant 0 : index
    %c0_2 = arith.constant 0 : index
    %c0_3 = arith.constant 0 : index
    %1 = vector.load %arg2[%c0_1, %c0_2, %c0_3] : memref<1x4x256xf32, #tpu.memory_space<vmem>>, vector<1x4x256xf32>
    %2 = vector.shape_cast %1 : vector<1x4x256xf32> to vector<4x256xf32>
    %cst = arith.constant dense<0.000000e+00> : vector<4x256xf32>
    %3 = tpu.matmul %0, %2, %cst {dimension_numbers = #tpu.dot_dimension_numbers<[1], [0], [0], [1], [0, 0, 1, 1], [], []>} : vector<4x4xf32>, vector<4x256xf32>, vector<4x256xf32> -> vector<4x256xf32>
    %c0_4 = arith.constant 0 : index
    %c0_5 = arith.constant 0 : index
    %4 = vector.load %arg6[%c0_4, %c0_5] : memref<4x1xf32, #tpu.memory_space<vmem>>, vector<4x1xf32>
    %5 = vector.broadcast %4 : vector<4x1xf32> to vector<4x256xf32>
    %6 = arith.addf %3, %5 : vector<4x256xf32>
    %c0_6 = arith.constant 0 : index
    %c0_7 = arith.constant 0 : index
    %7 = vector.load %arg8[%c0_6, %c0_7] : memref<4x256xf32, #tpu.memory_space<vmem>>, vector<4x256xf32>
    tpu.vector_store %arg8[%c0_6, %c0_7], %6 {strides = array<i32>} : memref<4x256xf32, #tpu.memory_space<vmem>>, vector<4x256xf32>,
    %c0_8 = arith.constant 0 : index
    %c0_9 = arith.constant 0 : index
    %8 = vector.load %arg8[%c0_8, %c0_9] : memref<4x256xf32, #tpu.memory_space<vmem>>, vector<4x16xf32>
    %c0_10 = arith.constant 0 : index
    %c0_11 = arith.constant 0 : index
    %c0_12 = arith.constant 0 : index
    %9 = vector.load %arg9[%c0_10, %c0_11, %c0_12] : memref<4x16x16xf32, #tpu.memory_space<vmem>>, vector<4x1x16xf32>
    %10 = vector.shape_cast %9 : vector<4x1x16xf32> to vector<4x16xf32>
    %11 = vector.shape_cast %8 : vector<4x16xf32> to vector<4x1x16xf32>
    tpu.vector_store %arg9[%c0_10, %c0_11, %c0_12], %11 {strides = array<i32>} : memref<4x16x16xf32, #tpu.memory_space<vmem>>, vector<4x1x16xf32>,
    %c0_13 = arith.constant 0 : index
    %c16 = arith.constant 16 : index
    %12 = vector.load %arg8[%c0_13, %c16] : memref<4x256xf32, #tpu.memory_space<vmem>>, vector<4x16xf32>
    %c0_14 = arith.constant 0 : index
    %c1 = arith.constant 1 : index
    %c0_15 = arith.constant 0 : index
    %13 = vector.load %arg9[%c0_14, %c1, %c0_15] : memref<4x16x16xf32, #tpu.memory_space<vmem>>, vector<4x1x16xf32>
    %14 = vector.shape_cast %13 : vector<4x1x16xf32> to vector<4x16xf32>
    %15 = vector.shape_cast %12 : vector<4x16xf32> to vector<4x1x16xf32>
    tpu.vector_store %arg9[%c0_14, %c1, %c0_15], %15 {strides = array<i32>} : memref<4x16x16xf32, #tpu.memory_space<vmem>>, vector<4x1x16xf32>,
    %c0_16 = arith.constant 0 : index
    %c32 = arith.constant 32 : index
    %16 = vector.load %arg8[%c0_16, %c32] : memref<4x256xf32, #tpu.memory_space<vmem>>, vector<4x16xf32>
    %c0_17 = arith.constant 0 : index
    %c2 = arith.constant 2 : index
    %c0_18 = arith.constant 0 : index
    %17 = vector.load %arg9[%c0_17, %c2, %c0_18] : memref<4x16x16xf32, #tpu.memory_space<vmem>>, vector<4x1x16xf32>
    %18 = vector.shape_cast %17 : vector<4x1x16xf32> to vector<4x16xf32>
    %19 = vector.shape_cast %16 : vector<4x16xf32> to vector<4x1x16xf32>
    tpu.vector_store %arg9[%c0_17, %c2, %c0_18], %19 {strides = array<i32>} : memref<4x16x16xf32, #tpu.memory_space<vmem>>, vector<4x1x16xf32>,
    %c0_19 = arith.constant 0 : index
    %c48 = arith.constant 48 : index
    %20 = vector.load %arg8[%c0_19, %c48] : memref<4x256xf32, #tpu.memory_space<vmem>>, vector<4x16xf32>
    %c0_20 = arith.constant 0 : index
    %c3 = arith.constant 3 : index
    %c0_21 = arith.constant 0 : index
    %21 = vector.load %arg9[%c0_20, %c3, %c0_21] : memref<4x16x16xf32, #tpu.memory_space<vmem>>, vector<4x1x16xf32>
    %22 = vector.shape_cast %21 : vector<4x1x16xf32> to vector<4x16xf32>
    %23 = vector.shape_cast %20 : vector<4x16xf32> to vector<4x1x16xf32>
    tpu.vector_store %arg9[%c0_20, %c3, %c0_21], %23 {strides = array<i32>} : memref<4x16x16xf32, #tpu.memory_space<vmem>>, vector<4x1x16xf32>,
    %c0_22 = arith.constant 0 : index
    %c64 = arith.constant 64 : index
    %24 = vector.load %arg8[%c0_22, %c64] : memref<4x256xf32, #tpu.memory_space<vmem>>, vector<4x16xf32>
    %c0_23 = arith.constant 0 : index
    %c4 = arith.constant 4 : index
    %c0_24 = arith.constant 0 : index
    %25 = vector.load %arg9[%c0_23, %c4, %c0_24] : memref<4x16x16xf32, #tpu.memory_space<vmem>>, vector<4x1x16xf32>
    %26 = vector.shape_cast %25 : vector<4x1x16xf32> to vector<4x16xf32>
    %27 = vector.shape_cast %24 : vector<4x16xf32> to vector<4x1x16xf32>
    tpu.vector_store %arg9[%c0_23, %c4, %c0_24], %27 {strides = array<i32>} : memref<4x16x16xf32, #tpu.memory_space<vmem>>, vector<4x1x16xf32>,
    %c0_25 = arith.constant 0 : index
    %c80 = arith.constant 80 : index
    %28 = vector.load %arg8[%c0_25, %c80] : memref<4x256xf32, #tpu.memory_space<vmem>>, vector<4x16xf32>
    %c0_26 = arith.constant 0 : index
    %c5 = arith.constant 5 : index
    %c0_27 = arith.constant 0 : index
    %29 = vector.load %arg9[%c0_26, %c5, %c0_27] : memref<4x16x16xf32, #tpu.memory_space<vmem>>, vector<4x1x16xf32>
    %30 = vector.shape_cast %29 : vector<4x1x16xf32> to vector<4x16xf32>
    %31 = vector.shape_cast %28 : vector<4x16xf32> to vector<4x1x16xf32>
    tpu.vector_store %arg9[%c0_26, %c5, %c0_27], %31 {strides = array<i32>} : memref<4x16x16xf32, #tpu.memory_space<vmem>>, vector<4x1x16xf32>,
    %c0_28 = arith.constant 0 : index
    %c96 = arith.constant 96 : index
    %32 = vector.load %arg8[%c0_28, %c96] : memref<4x256xf32, #tpu.memory_space<vmem>>, vector<4x16xf32>
    %c0_29 = arith.constant 0 : index
    %c6 = arith.constant 6 : index
    %c0_30 = arith.constant 0 : index
    %33 = vector.load %arg9[%c0_29, %c6, %c0_30] : memref<4x16x16xf32, #tpu.memory_space<vmem>>, vector<4x1x16xf32>
    %34 = vector.shape_cast %33 : vector<4x1x16xf32> to vector<4x16xf32>
    %35 = vector.shape_cast %32 : vector<4x16xf32> to vector<4x1x16xf32>
    tpu.vector_store %arg9[%c0_29, %c6, %c0_30], %35 {strides = array<i32>} : memref<4x16x16xf32, #tpu.memory_space<vmem>>, vector<4x1x16xf32>,
    %c0_31 = arith.constant 0 : index
    %c112 = arith.constant 112 : index
    %36 = vector.load %arg8[%c0_31, %c112] : memref<4x256xf32, #tpu.memory_space<vmem>>, vector<4x16xf32>
    %c0_32 = arith.constant 0 : index
    %c7 = arith.constant 7 : index
    %c0_33 = arith.constant 0 : index
    %37 = vector.load %arg9[%c0_32, %c7, %c0_33] : memref<4x16x16xf32, #tpu.memory_space<vmem>>, vector<4x1x16xf32>
    %38 = vector.shape_cast %37 : vector<4x1x16xf32> to vector<4x16xf32>
    %39 = vector.shape_cast %36 : vector<4x16xf32> to vector<4x1x16xf32>
    tpu.vector_store %arg9[%c0_32, %c7, %c0_33], %39 {strides = array<i32>} : memref<4x16x16xf32, #tpu.memory_space<vmem>>, vector<4x1x16xf32>,
    %c0_34 = arith.constant 0 : index
    %c128 = arith.constant 128 : index
    %40 = vector.load %arg8[%c0_34, %c128] : memref<4x256xf32, #tpu.memory_space<vmem>>, vector<4x16xf32>
    %c0_35 = arith.constant 0 : index
    %c8 = arith.constant 8 : index
    %c0_36 = arith.constant 0 : index
    %41 = vector.load %arg9[%c0_35, %c8, %c0_36] : memref<4x16x16xf32, #tpu.memory_space<vmem>>, vector<4x1x16xf32>
    %42 = vector.shape_cast %41 : vector<4x1x16xf32> to vector<4x16xf32>
    %43 = vector.shape_cast %40 : vector<4x16xf32> to vector<4x1x16xf32>
    tpu.vector_store %arg9[%c0_35, %c8, %c0_36], %43 {strides = array<i32>} : memref<4x16x16xf32, #tpu.memory_space<vmem>>, vector<4x1x16xf32>,
    %c0_37 = arith.constant 0 : index
    %c144 = arith.constant 144 : index
    %44 = vector.load %arg8[%c0_37, %c144] : memref<4x256xf32, #tpu.memory_space<vmem>>, vector<4x16xf32>
    %c0_38 = arith.constant 0 : index
    %c9 = arith.constant 9 : index
    %c0_39 = arith.constant 0 : index
    %45 = vector.load %arg9[%c0_38, %c9, %c0_39] : memref<4x16x16xf32, #tpu.memory_space<vmem>>, vector<4x1x16xf32>
    %46 = vector.shape_cast %45 : vector<4x1x16xf32> to vector<4x16xf32>
    %47 = vector.shape_cast %44 : vector<4x16xf32> to vector<4x1x16xf32>
    tpu.vector_store %arg9[%c0_38, %c9, %c0_39], %47 {strides = array<i32>} : memref<4x16x16xf32, #tpu.memory_space<vmem>>, vector<4x1x16xf32>,
    %c0_40 = arith.constant 0 : index
    %c160 = arith.constant 160 : index
    %48 = vector.load %arg8[%c0_40, %c160] : memref<4x256xf32, #tpu.memory_space<vmem>>, vector<4x16xf32>
    %c0_41 = arith.constant 0 : index
    %c10 = arith.constant 10 : index
    %c0_42 = arith.constant 0 : index
    %49 = vector.load %arg9[%c0_41, %c10, %c0_42] : memref<4x16x16xf32, #tpu.memory_space<vmem>>, vector<4x1x16xf32>
    %50 = vector.shape_cast %49 : vector<4x1x16xf32> to vector<4x16xf32>
    %51 = vector.shape_cast %48 : vector<4x16xf32> to vector<4x1x16xf32>
    tpu.vector_store %arg9[%c0_41, %c10, %c0_42], %51 {strides = array<i32>} : memref<4x16x16xf32, #tpu.memory_space<vmem>>, vector<4x1x16xf32>,
    %c0_43 = arith.constant 0 : index
    %c176 = arith.constant 176 : index
    %52 = vector.load %arg8[%c0_43, %c176] : memref<4x256xf32, #tpu.memory_space<vmem>>, vector<4x16xf32>
    %c0_44 = arith.constant 0 : index
    %c11 = arith.constant 11 : index
    %c0_45 = arith.constant 0 : index
    %53 = vector.load %arg9[%c0_44, %c11, %c0_45] : memref<4x16x16xf32, #tpu.memory_space<vmem>>, vector<4x1x16xf32>
    %54 = vector.shape_cast %53 : vector<4x1x16xf32> to vector<4x16xf32>
    %55 = vector.shape_cast %52 : vector<4x16xf32> to vector<4x1x16xf32>
    tpu.vector_store %arg9[%c0_44, %c11, %c0_45], %55 {strides = array<i32>} : memref<4x16x16xf32, #tpu.memory_space<vmem>>, vector<4x1x16xf32>,
    %c0_46 = arith.constant 0 : index
    %c192 = arith.constant 192 : index
    %56 = vector.load %arg8[%c0_46, %c192] : memref<4x256xf32, #tpu.memory_space<vmem>>, vector<4x16xf32>
    %c0_47 = arith.constant 0 : index
    %c12 = arith.constant 12 : index
    %c0_48 = arith.constant 0 : index
    %57 = vector.load %arg9[%c0_47, %c12, %c0_48] : memref<4x16x16xf32, #tpu.memory_space<vmem>>, vector<4x1x16xf32>
    %58 = vector.shape_cast %57 : vector<4x1x16xf32> to vector<4x16xf32>
    %59 = vector.shape_cast %56 : vector<4x16xf32> to vector<4x1x16xf32>
    tpu.vector_store %arg9[%c0_47, %c12, %c0_48], %59 {strides = array<i32>} : memref<4x16x16xf32, #tpu.memory_space<vmem>>, vector<4x1x16xf32>,
    %c0_49 = arith.constant 0 : index
    %c208 = arith.constant 208 : index
    %60 = vector.load %arg8[%c0_49, %c208] : memref<4x256xf32, #tpu.memory_space<vmem>>, vector<4x16xf32>
    %c0_50 = arith.constant 0 : index
    %c13 = arith.constant 13 : index
    %c0_51 = arith.constant 0 : index
    %61 = vector.load %arg9[%c0_50, %c13, %c0_51] : memref<4x16x16xf32, #tpu.memory_space<vmem>>, vector<4x1x16xf32>
    %62 = vector.shape_cast %61 : vector<4x1x16xf32> to vector<4x16xf32>
    %63 = vector.shape_cast %60 : vector<4x16xf32> to vector<4x1x16xf32>
    tpu.vector_store %arg9[%c0_50, %c13, %c0_51], %63 {strides = array<i32>} : memref<4x16x16xf32, #tpu.memory_space<vmem>>, vector<4x1x16xf32>,
    %c0_52 = arith.constant 0 : index
    %c224 = arith.constant 224 : index
    %64 = vector.load %arg8[%c0_52, %c224] : memref<4x256xf32, #tpu.memory_space<vmem>>, vector<4x16xf32>
    %c0_53 = arith.constant 0 : index
    %c14 = arith.constant 14 : index
    %c0_54 = arith.constant 0 : index
    %65 = vector.load %arg9[%c0_53, %c14, %c0_54] : memref<4x16x16xf32, #tpu.memory_space<vmem>>, vector<4x1x16xf32>
    %66 = vector.shape_cast %65 : vector<4x1x16xf32> to vector<4x16xf32>
    %67 = vector.shape_cast %64 : vector<4x16xf32> to vector<4x1x16xf32>
    tpu.vector_store %arg9[%c0_53, %c14, %c0_54], %67 {strides = array<i32>} : memref<4x16x16xf32, #tpu.memory_space<vmem>>, vector<4x1x16xf32>,
    %c0_55 = arith.constant 0 : index
    %c240 = arith.constant 240 : index
    %68 = vector.load %arg8[%c0_55, %c240] : memref<4x256xf32, #tpu.memory_space<vmem>>, vector<4x16xf32>
    %c0_56 = arith.constant 0 : index
    %c15 = arith.constant 15 : index
    %c0_57 = arith.constant 0 : index
    %69 = vector.load %arg9[%c0_56, %c15, %c0_57] : memref<4x16x16xf32, #tpu.memory_space<vmem>>, vector<4x1x16xf32>
    %70 = vector.shape_cast %69 : vector<4x1x16xf32> to vector<4x16xf32>
    %71 = vector.shape_cast %68 : vector<4x16xf32> to vector<4x1x16xf32>
    tpu.vector_store %arg9[%c0_56, %c15, %c0_57], %71 {strides = array<i32>} : memref<4x16x16xf32, #tpu.memory_space<vmem>>, vector<4x1x16xf32>,
    %c0_58 = arith.constant 0 : index
    %c0_59 = arith.constant 0 : index
    %c0_60 = arith.constant 0 : index
    %72 = vector.load %arg9[%c0_58, %c0_59, %c0_60] : memref<4x16x16xf32, #tpu.memory_space<vmem>>, vector<4x16x16xf32>
    %73 = vector.shape_cast %72 : vector<4x16x16xf32> to vector<64x16xf32>
    %c0_61 = arith.constant 0 : index
    %c0_62 = arith.constant 0 : index
    %74 = vector.load %arg4[%c0_61, %c0_62] : memref<16x32xf32, #tpu.memory_space<vmem>>, vector<16x32xf32>
    %cst_63 = arith.constant dense<0.000000e+00> : vector<64x32xf32>
    %75 = tpu.matmul %73, %74, %cst_63 {dimension_numbers = #tpu.dot_dimension_numbers<[1], [0], [0], [1], [0, 0, 1, 1], [], []>} : vector<64x16xf32>, vector<16x32xf32>, vector<64x32xf32> -> vector<64x32xf32>
    %76 = vector.shape_cast %75 : vector<64x32xf32> to vector<4x16x32xf32>
    %c0_64 = arith.constant 0 : index
    %c0_65 = arith.constant 0 : index
    %77 = vector.load %arg3[%c0_64, %c0_65] : memref<32x16xf32, #tpu.memory_space<vmem>>, vector<32x16xf32>
    %78 = vector.shape_cast %77 : vector<32x16xf32> to vector<1x32x16xf32>
    %79 = vector.broadcast %78 : vector<1x32x16xf32> to vector<4x32x16xf32>
    %cst_66 = arith.constant dense<0.000000e+00> : vector<4x32x32xf32>
    %80 = tpu.matmul %79, %76, %cst_66 {dimension_numbers = #tpu.dot_dimension_numbers<[2], [1], [1], [2], [0, 0, 0, 1, 1, 2], [0], [0]>} : vector<4x32x16xf32>, vector<4x16x32xf32>, vector<4x32x32xf32> -> vector<4x32x32xf32>
    %c0_67 = arith.constant 0 : index
    %c0_68 = arith.constant 0 : index
    %c0_69 = arith.constant 0 : index
    %c0_70 = arith.constant 0 : index
    %81 = vector.load %arg7[%c0_67, %c0_68, %c0_69, %c0_70] : memref<1x4x32x32xf32, #tpu.memory_space<vmem>>, vector<1x4x32x32xf32>
    %82 = vector.shape_cast %81 : vector<1x4x32x32xf32> to vector<4x32x32xf32>
    %83 = vector.shape_cast %80 : vector<4x32x32xf32> to vector<1x4x32x32xf32>
    tpu.vector_store %arg7[%c0_67, %c0_68, %c0_69, %c0_70], %83 {strides = array<i32>} : memref<1x4x32x32xf32, #tpu.memory_space<vmem>>, vector<1x4x32x32xf32>,
    return
  }
  func.func @transform_0(%arg0: i32, %arg1: i32) -> (i32, i32, i32) {
    %c0_i32 = arith.constant 0 : i32
    %c0_i32_0 = arith.constant 0 : i32
    %c0_i32_1 = arith.constant 0 : i32
    return %arg0, %c0_i32, %c0_i32_0 : i32, i32, i32
  }
  func.func @transform_1(%arg0: i32, %arg1: i32) -> (i32, i32) {
    %c0_i32 = arith.constant 0 : i32
    %c0_i32_0 = arith.constant 0 : i32
    %c0_i32_1 = arith.constant 0 : i32
    return %c0_i32, %c0_i32_0 : i32, i32
  }
  func.func @transform_2(%arg0: i32, %arg1: i32) -> (i32, i32) {
    %c0_i32 = arith.constant 0 : i32
    %c0_i32_0 = arith.constant 0 : i32
    %c0_i32_1 = arith.constant 0 : i32
    return %c0_i32, %c0_i32_0 : i32, i32
  }
  func.func @transform_3(%arg0: i32, %arg1: i32) -> (i32, i32) {
    %c0_i32 = arith.constant 0 : i32
    %c0_i32_0 = arith.constant 0 : i32
    return %arg1, %c0_i32 : i32, i32
  }
  func.func @transform_4(%arg0: i32, %arg1: i32) -> (i32, i32) {
    %c0_i32 = arith.constant 0 : i32
    %c0_i32_0 = arith.constant 0 : i32
    return %arg1, %c0_i32 : i32, i32
  }
  func.func @transform_5(%arg0: i32, %arg1: i32) -> (i32, i32, i32, i32) {
    %c0_i32 = arith.constant 0 : i32
    %c0_i32_0 = arith.constant 0 : i32
    %c0_i32_1 = arith.constant 0 : i32
    return %arg0, %arg1, %c0_i32, %c0_i32_0 : i32, i32, i32, i32
  }
}

</mosaic_0001>

<llo_original>
// kernel: tpu_custom_call.1
$region0: #{tpu_custom_call.1}
  #allocation0 [shape = 'u32[]', space=smem, size = 0x4, offset = 0x4, fixed_abs, tag = 'smem constant byte address 0x4 - core index']
  #allocation1 [shape = 'u32[144,128]{1,0:T(1,128)}', space=vmem, size = 0x12000, scoped, tag = 'internal scratch']
  #allocation2 [shape = 'f32[4,256]{1,0:T(4,128)}', space=vmem, size = 0x1000, scoped, tag = 'scratch operand']
  #allocation3 [shape = 'f32[4,16,16]{2,1,0:T(8,128)}', space=vmem, size = 0x8000, scoped, tag = 'scratch operand']
  %s0 = inlined_call_operand.hbm [shape: f32[2,4,256], index: 0, kind: input, shape index: {}]
  %s1 = inlined_call_operand.hbm [shape: f32[32,16], index: 1, kind: input, shape index: {}]
  %s2 = inlined_call_operand.hbm [shape: f32[16,32], index: 2, kind: input, shape index: {}]
  %s3 = inlined_call_operand.hbm [shape: f32[4,4], index: 3, kind: input, shape index: {}]
  %s4 = inlined_call_operand.hbm [shape: f32[4,1], index: 4, kind: input, shape index: {}]
  %s5 = inlined_call_operand.hbm [shape: f32[2,4,32,32], index: 5, kind: output, shape index: {}]
  %s6 = sld [smem:[#allocation0]]
  $region73: #{tpu_custom_call.1} parent=0
    _
  %s8 = ssub.s32 1, %s6
  %s9 = scalar_select 0, %s8, %s6
  $region1: #{tpu_custom_call.1} parent=0
    #allocation4 [shape = 'u8[8192]{0}', space=vmem, size = 0x2000, scoped, tag = 'input window, operand 0']
    #allocation5 [shape = 's32[2]{0}', space=sflag, size = 0x8, scoped, tag = 'scoped memory for tpu_custom_call.1']
    #allocation6 [shape = 's32[2]{0}', space=sflag, size = 0x8, scoped, tag = 'scoped memory for tpu_custom_call.1']
    #allocation7 [shape = 'u8[16384]{0}', space=vmem, size = 0x4000, scoped, tag = 'input window, operand 1, single buffered']
    #allocation8 [shape = 's32[1]{0}', space=sflag, size = 0x4, scoped, tag = 'scoped memory for tpu_custom_call.1']
    #allocation9 [shape = 'u8[8192]{0}', space=vmem, size = 0x2000, scoped, tag = 'input window, operand 2, single buffered']
    #allocation10 [shape = 'u8[2048]{0}', space=vmem, size = 0x800, scoped, tag = 'input window, operand 3, single buffered']
    #allocation11 [shape = 's32[1]{0}', space=sflag, size = 0x4, scoped, tag = 'scoped memory for tpu_custom_call.1']
    #allocation12 [shape = 'u8[2048]{0}', space=vmem, size = 0x800, scoped, tag = 'input window, operand 4, single buffered']
    #allocation13 [shape = 'u8[131072]{0}', space=vmem, size = 0x20000, scoped, tag = 'output window, operand 0']
    %10 = vsyncpa [#allocation5], 0
    %s11 = scalar_lea.sflag [#allocation5], 1
    %12 = vsyncpa %s11, 0
    %13 = vsyncpa [#allocation8], 0
    %14 = vsyncpa [#allocation11], 0
    %15 = vsyncpa [#allocation6], 0
    %s16 = scalar_lea.sflag [#allocation6], 1
    %17 = vsyncpa %s16, 0
    loop: start=0, step=1, limit=4
    $region2: #{tpu_custom_call.1} parent=1 // loop_pre_header
      _
    $region3: #{tpu_custom_call.1} parent=1 // loop_header
      %s19 = sphi 0, %s23
      %p20 = scmp.ge.s32.totalorder %s19, 4
      %s26 = sphi 0, %s38
      %s27 = sphi 0, %s34
      %s28 = sphi 0, %s26
      %s29 = sphi 0, %s27
      %s30 = sphi 0, %s28
      %s31 = sphi 0, %s29
      %s41 = sphi 0, %s43
      %s44 = sphi 0, %s41
      %s45 = sphi 0, %s44
      %s61 = sphi 0, %s45
      %s65 = sphi 0, %s65
      %s67 = sphi 0, %s65
      %s68 = sphi 0, %s67
      %s82 = sphi 0, %s68
      %s86 = sphi 0, %s86
      %s88 = sphi 0, %s86
      %s89 = sphi 0, %s88
      %s103 = sphi 0, %s89
      %s109 = sphi 0, %s111
      %s112 = sphi 0, %s109
      %s113 = sphi 0, %s112
      %s129 = sphi 0, %s113
      %s135 = sphi 0, %s137
      %s138 = sphi 0, %s135
      %s139 = sphi 0, %s138
      %s155 = sphi 0, %s139
      %s163 = sphi 0, %s165
      %s166 = sphi 0, %s163
      %s167 = sphi 0, %s166
      %s183 = sphi 0, %s167
    $region4: #{tpu_custom_call.1} parent=1 // loop_header_branch
      %22 = sbr.rel (%p20) target = $region8
    $region5: #{tpu_custom_call.1} parent=1 // loop_body
      %s24 = ssub.s32 %s19, 1
      %s25 = ssub.s32 %s19, 2
      %s32 = sadd.s32 1, %s27
      %p33 = scmp.ge.s32.totalorder %s32, 1
      %s34 = scalar_select %p33, 0, %s32
      %s35 = sadd.s32 1, %s26
      %s36 = scalar_select %p33, %s35, %s26
      %p37 = scmp.ge.s32.totalorder %s36, 2
      %s38 = scalar_select %p37, 0, %s36
      %s39 = ssub.s32 %s26, %s38
      %p40 = scmp.eq.s32.totalorder %s39, 0
      %s42 = sadd.s32 %s41, 1
      %s43 = scalar_select %p40, %s41, %s42
      %p46 = pneg %p40
      %p47 = scmp.eq.s32.totalorder %s19, 1
      %p48 = por %p46, %p47
      %p49 = scmp.ne.s32.totalorder %s41, %s44
      %p50 = scmp.eq.s32.totalorder %s19, 0
      %p51 = por %p49, %p50
      %p52 = scmp.ne.s32.totalorder %s41, %s44
      %p53 = scmp.eq.s32.totalorder %s24, 1
      %p54 = por %p52, %p53
      %p55 = scmp.ne.s32.totalorder %s44, %s45
      %p56 = scmp.eq.s32.totalorder %s24, 0
      %p57 = por %p55, %p56
      %p58 = scmp.ne.s32.totalorder %s44, %s45
      %p59 = scmp.eq.s32.totalorder %s25, 1
      %p60 = por %p58, %p59
      %p62 = scmp.ne.s32.totalorder %s45, %s61
      %p63 = scmp.eq.s32.totalorder %s25, 0
      %p64 = por %p62, %p63
      %s66 = sadd.s32 %s65, 1
      %p69 = scmp.eq.s32.totalorder %s19, 1
      %p70 = scmp.ne.s32.totalorder %s65, %s67
      %p71 = scmp.eq.s32.totalorder %s19, 0
      %p72 = por %p70, %p71
      %p73 = scmp.ne.s32.totalorder %s65, %s67
      %p74 = scmp.eq.s32.totalorder %s24, 1
      %p75 = por %p73, %p74
      %p76 = scmp.ne.s32.totalorder %s67, %s68
      %p77 = scmp.eq.s32.totalorder %s24, 0
      %p78 = por %p76, %p77
      %p79 = scmp.ne.s32.totalorder %s67, %s68
      %p80 = scmp.eq.s32.totalorder %s25, 1
      %p81 = por %p79, %p80
      %p83 = scmp.ne.s32.totalorder %s68, %s82
      %p84 = scmp.eq.s32.totalorder %s25, 0
      %p85 = por %p83, %p84
      %s87 = sadd.s32 %s86, 1
      %p90 = scmp.eq.s32.totalorder %s19, 1
      %p91 = scmp.ne.s32.totalorder %s86, %s88
      %p92 = scmp.eq.s32.totalorder %s19, 0
      %p93 = por %p91, %p92
      %p94 = scmp.ne.s32.totalorder %s86, %s88
      %p95 = scmp.eq.s32.totalorder %s24, 1
      %p96 = por %p94, %p95
      %p97 = scmp.ne.s32.totalorder %s88, %s89
      %p98 = scmp.eq.s32.totalorder %s24, 0
      %p99 = por %p97, %p98
      %p100 = scmp.ne.s32.totalorder %s88, %s89
      %p101 = scmp.eq.s32.totalorder %s25, 1
      %p102 = por %p100, %p101
      %p104 = scmp.ne.s32.totalorder %s89, %s103
      %p105 = scmp.eq.s32.totalorder %s25, 0
      %p106 = por %p104, %p105
      %s107 = ssub.s32 %s27, %s34
      %p108 = scmp.eq.s32.totalorder %s107, 0
      %s110 = sadd.s32 %s109, 1
      %s111 = scalar_select %p108, %s109, %s110
      %p114 = pneg %p108
      %p115 = scmp.eq.s32.totalorder %s19, 1
      %p116 = por %p114, %p115
      %p117 = scmp.ne.s32.totalorder %s109, %s112
      %p118 = scmp.eq.s32.totalorder %s19, 0
      %p119 = por %p117, %p118
      %p120 = scmp.ne.s32.totalorder %s109, %s112
      %p121 = scmp.eq.s32.totalorder %s24, 1
      %p122 = por %p120, %p121
      %p123 = scmp.ne.s32.totalorder %s112, %s113
      %p124 = scmp.eq.s32.totalorder %s24, 0
      %p125 = por %p123, %p124
      %p126 = scmp.ne.s32.totalorder %s112, %s113
      %p127 = scmp.eq.s32.totalorder %s25, 1
      %p128 = por %p126, %p127
      %p130 = scmp.ne.s32.totalorder %s113, %s129
      %p131 = scmp.eq.s32.totalorder %s25, 0
      %p132 = por %p130, %p131
      %s133 = ssub.s32 %s27, %s34
      %p134 = scmp.eq.s32.totalorder %s133, 0
      %s136 = sadd.s32 %s135, 1
      %s137 = scalar_select %p134, %s135, %s136
      %p140 = pneg %p134
      %p141 = scmp.eq.s32.totalorder %s19, 1
      %p142 = por %p140, %p141
      %p143 = scmp.ne.s32.totalorder %s135, %s138
      %p144 = scmp.eq.s32.totalorder %s19, 0
      %p145 = por %p143, %p144
      %p146 = scmp.ne.s32.totalorder %s135, %s138
      %p147 = scmp.eq.s32.totalorder %s24, 1
      %p148 = por %p146, %p147
      %p149 = scmp.ne.s32.totalorder %s138, %s139
      %p150 = scmp.eq.s32.totalorder %s24, 0
      %p151 = por %p149, %p150
      %p152 = scmp.ne.s32.totalorder %s138, %s139
      %p153 = scmp.eq.s32.totalorder %s25, 1
      %p154 = por %p152, %p153
      %p156 = scmp.ne.s32.totalorder %s139, %s155
      %p157 = scmp.eq.s32.totalorder %s25, 0
      %p158 = por %p156, %p157
      %s159 = ssub.s32 %s26, %s38
      %s160 = ssub.s32 %s27, %s34
      %s161 = sor.u32 %s159, %s160
      %p162 = scmp.eq.s32.totalorder %s161, 0
      %s164 = sadd.s32 %s163, 1
      %s165 = scalar_select %p162, %s163, %s164
      %p168 = pneg %p162
      %p169 = scmp.eq.s32.totalorder %s19, 1
      %p170 = por %p168, %p169
      %p171 = scmp.ne.s32.totalorder %s163, %s166
      %p172 = scmp.eq.s32.totalorder %s19, 0
      %p173 = por %p171, %p172
      %p174 = scmp.ne.s32.totalorder %s163, %s166
      %p175 = scmp.eq.s32.totalorder %s24, 1
      %p176 = por %p174, %p175
      %p177 = scmp.ne.s32.totalorder %s166, %s167
      %p178 = scmp.eq.s32.totalorder %s24, 0
      %p179 = por %p177, %p178
      %p180 = scmp.ne.s32.totalorder %s166, %s167
      %p181 = scmp.eq.s32.totalorder %s25, 1
      %p182 = por %p180, %p181
      %p184 = scmp.ne.s32.totalorder %s167, %s183
      %p185 = scmp.eq.s32.totalorder %s25, 0
      %p186 = por %p184, %p185
      %p187 = scmp.le.s32.totalorder 1, %s19
      %p188 = scmp.lt.s32.totalorder %s19, 3
      %p189 = pnand %p187, %p188
      %p190 = pneg %p189
      // Predicated region
      $region9: #{tpu_custom_call.1} parent=5 // pred_check
        _
      $region10: #{tpu_custom_call.1} parent=5 // pred_check_branch
        %192 = sbr.rel (%p189) target = $region12
      $region11: #{tpu_custom_call.1} parent=5 // pred_region
        %s193 = ssub.s32 %s19, 1
        // Predicated region
        $region13: #{tpu_custom_call.1} parent=11 // pred_check
          %p194 = pneg %p78
        $region14: #{tpu_custom_call.1} parent=11 // pred_check_branch
          %196 = sbr.rel (%p194) target = $region16
        $region15: #{tpu_custom_call.1} parent=11 // pred_region
          %s198 = ssub.s32 512, 512
          %199 = vsyncadd [#allocation8], %s198
          %s200 = sshll.u32 [#allocation7], 4
          %s201 = int_to_ptr.vmem [resolvable:$true] %s200
          %206 = dma.hbm_to_vmem [thread:$0]  %s1, 512, %s201, [#allocation8], 128, 128, 8
        $region16: #{tpu_custom_call.1} parent=11 // pred_fallthru
          _
        // Predicated region
        $region17: #{tpu_custom_call.1} parent=11 // pred_check
          %p207 = pneg %p99
        $region18: #{tpu_custom_call.1} parent=11 // pred_check_branch
          %209 = sbr.rel (%p207) target = $region20
        $region19: #{tpu_custom_call.1} parent=11 // pred_region
          %s211 = ssub.s32 256, 256
          %212 = vsyncadd [#allocation8], %s211
          %s213 = sshll.u32 [#allocation9], 4
          %s214 = int_to_ptr.vmem [resolvable:$true] %s213
          %219 = dma.hbm_to_vmem [thread:$0]  %s2, 256, %s214, [#allocation8], 128, 128, 8
        $region20: #{tpu_custom_call.1} parent=11 // pred_fallthru
          _
        // Predicated region
        $region21: #{tpu_custom_call.1} parent=11 // pred_check
          %p220 = pneg %p125
        $region22: #{tpu_custom_call.1} parent=11 // pred_check_branch
          %222 = sbr.rel (%p220) target = $region24
        $region23: #{tpu_custom_call.1} parent=11 // pred_region
          %s224 = ssub.s32 64, 64
          %225 = vsyncadd [#allocation11], %s224
          %s226 = smul.addr %s29, 64
          %s227 = scalar_lea.hbm %s3, %s226
          %s229 = sshll.u32 [#allocation10], 4
          %s230 = int_to_ptr.vmem [resolvable:$true] %s229
          %232 = dma.hbm_to_vmem [thread:$0]  %s227, 64, %s230, [#allocation11]
        $region24: #{tpu_custom_call.1} parent=11 // pred_fallthru
          _
        // Predicated region
        $region25: #{tpu_custom_call.1} parent=11 // pred_check
          %p233 = pneg %p151
        $region26: #{tpu_custom_call.1} parent=11 // pred_check_branch
          %235 = sbr.rel (%p233) target = $region28
        $region27: #{tpu_custom_call.1} parent=11 // pred_region
          %s237 = ssub.s32 64, 64
          %238 = vsyncadd [#allocation11], %s237
          %s239 = smul.addr %s29, 64
          %s240 = scalar_lea.hbm %s4, %s239
          %s242 = sshll.u32 [#allocation12], 4
          %s243 = int_to_ptr.vmem [resolvable:$true] %s242
          %245 = dma.hbm_to_vmem [thread:$0]  %s240, 64, %s243, [#allocation11]
        $region28: #{tpu_custom_call.1} parent=11 // pred_fallthru
          _
      $region12: #{tpu_custom_call.1} parent=5 // pred_fallthru
        _
      %p246 = scmp.lt.s32.totalorder %s19, 2
      // Predicated region
      $region29: #{tpu_custom_call.1} parent=5 // pred_check
        %p247 = pneg %p246
      $region30: #{tpu_custom_call.1} parent=5 // pred_check_branch
        %249 = sbr.rel (%p247) target = $region32
      $region31: #{tpu_custom_call.1} parent=5 // pred_region
        // Predicated region
        $region33: #{tpu_custom_call.1} parent=31 // pred_check
          %p250 = pneg %p51
        $region34: #{tpu_custom_call.1} parent=31 // pred_check_branch
          %252 = sbr.rel (%p250) target = $region36
        $region35: #{tpu_custom_call.1} parent=31 // pred_region
          %s253 = sand.u32 %s41, 1
          %s254 = scalar_lea.sflag [#allocation5], %s253
          %s255 = sand.u32 %s41, 1
          %s256 = smul.addr %s255, 8
          %s257 = scalar_lea.vmem [#allocation4], %s256
          %s259 = ssub.s32 128, 128
          %260 = vsyncadd %s254, %s259
          %s261 = smul.addr %s26, 2
          %s262 = smul.addr %s261, 64
          %s263 = scalar_lea.hbm %s0, %s262
          %s265 = sshll.u32 %s257, 4
          %s266 = int_to_ptr.vmem [resolvable:$true] %s265
          %268 = dma.hbm_to_vmem [thread:$0]  %s263, 128, %s266, %s254
        $region36: #{tpu_custom_call.1} parent=31 // pred_fallthru
          _
      $region32: #{tpu_custom_call.1} parent=5 // pred_fallthru
        _
      %p269 = scmp.le.s32.totalorder 1, %s19
      %p270 = scmp.lt.s32.totalorder %s19, 3
      %p271 = pnand %p269, %p270
      %p272 = pneg %p271
      // Predicated region
      $region37: #{tpu_custom_call.1} parent=5 // pred_check
        _
      $region38: #{tpu_custom_call.1} parent=5 // pred_check_branch
        %274 = sbr.rel (%p271) target = $region40
      $region39: #{tpu_custom_call.1} parent=5 // pred_region
        %s275 = ssub.s32 %s19, 1
        %s276 = sand.u32 %s44, 1
        %s277 = scalar_lea.sflag [#allocation5], %s276
        %s278 = sand.u32 %s44, 1
        %s279 = smul.addr %s278, 8
        %s280 = scalar_lea.vmem [#allocation4], %s279
        // Predicated region
        $region41: #{tpu_custom_call.1} parent=39 // pred_check
          %p281 = pneg %p57
        $region42: #{tpu_custom_call.1} parent=39 // pred_check_branch
          %283 = sbr.rel (%p281) target = $region44
        $region43: #{tpu_custom_call.1} parent=39 // pred_region
          %284 = dma.done %s277, 128
        $region44: #{tpu_custom_call.1} parent=39 // pred_fallthru
          _
        // Predicated region
        $region45: #{tpu_custom_call.1} parent=39 // pred_check
          %p285 = pneg %p78
        $region46: #{tpu_custom_call.1} parent=39 // pred_check_branch
          %287 = sbr.rel (%p285) target = $region48
        $region47: #{tpu_custom_call.1} parent=39 // pred_region
          %288 = dma.done [#allocation8], 512
        $region48: #{tpu_custom_call.1} parent=39 // pred_fallthru
          _
        // Predicated region
        $region49: #{tpu_custom_call.1} parent=39 // pred_check
          %p289 = pneg %p99
        $region50: #{tpu_custom_call.1} parent=39 // pred_check_branch
          %291 = sbr.rel (%p289) target = $region52
        $region51: #{tpu_custom_call.1} parent=39 // pred_region
          %292 = dma.done [#allocation8], 256
        $region52: #{tpu_custom_call.1} parent=39 // pred_fallthru
          _
        // Predicated region
        $region53: #{tpu_custom_call.1} parent=39 // pred_check
          %p293 = pneg %p125
        $region54: #{tpu_custom_call.1} parent=39 // pred_check_branch
          %295 = sbr.rel (%p293) target = $region56
        $region55: #{tpu_custom_call.1} parent=39 // pred_region
          %296 = dma.done [#allocation11], 64
        $region56: #{tpu_custom_call.1} parent=39 // pred_fallthru
          _
        // Predicated region
        $region57: #{tpu_custom_call.1} parent=39 // pred_check
          %p297 = pneg %p151
        $region58: #{tpu_custom_call.1} parent=39 // pred_check_branch
          %299 = sbr.rel (%p297) target = $region60
        $region59: #{tpu_custom_call.1} parent=39 // pred_region
          %300 = dma.done [#allocation11], 64
        $region60: #{tpu_custom_call.1} parent=39 // pred_fallthru
          _
        %s301 = sand.u32 %s44, 1
        %s302 = scalar_lea.sflag [#allocation5], %s301
        %s303 = sand.u32 %s44, 1
        %s304 = smul.addr %s303, 8
        %s305 = scalar_lea.vmem [#allocation4], %s304
        %p306 = pneg %p57
        %p307 = pneg %p54
        %p308 = pneg %p78
        %p309 = pneg %p75
        %p310 = pneg %p99
        %p311 = pneg %p96
        %p312 = pneg %p125
        %p313 = pneg %p122
        %p314 = pneg %p151
        %p315 = pneg %p148
        %p316 = pneg %p179
        %p317 = pneg %p176
        %s318 = sand.u32 %s166, 1
        %s319 = scalar_lea.sflag [#allocation6], %s318
        %s320 = sand.u32 %s166, 1
        %s321 = smul.addr %s320, 128
        %s322 = scalar_lea.vmem [#allocation13], %s321
        %s323 = smul.u32 4, %s29
        %v324 = vld [vmem:[#allocation10] sm:$0xf]
        %v325 = vld [vmem:[%s280] sm:$0xff]
        %v326 = vld [vmem:[#allocation12] sm:$0xf]
        %328 = vset.pattern.permute.xlu0 0
        %329 = vperm.xlu0 %328, %v326
        %v330 = vpop.permute.xlu0 %329
        %v333 = vcombine.high %v325, %v325
        %vm334 = vcmask 31744
        %v336 = vsel %vm334, %v324, 0
        %vm338 = vcmask 1043456
        %v339 = vsel %vm338, %v325, 0
        %v341 = vsel %vm338, %v333, 0
        %343 = vmatprep.subr.mxu0 %v341
        %344 = vmatpush1.msra.mxu0 %v339
        %345 = vmatprep.subr.mxu0 0.0
        %346 = vmatpush1.msra.mxu0 0.0
        %347 = vmatprep.subr.mxu0 0.0
        %348 = vmatpush1.msra.mxu0 0.0
        %349 = vmatprep.subr.mxu0 0.0
        %350 = vmatpush1.msra.mxu0 0.0
        %351 = vmatprep.subr.mxu0 0.0
        %352 = vmatpush1.msra.mxu0 0.0
        %353 = vmatprep.subr.mxu0 0.0
        %354 = vmatpush1.msra.mxu0 0.0
        %355 = vmatprep.subr.mxu0 0.0
        %356 = vmatpush1.msra.mxu0 0.0
        %357 = vmatprep.subr.mxu0 0.0
        %358 = vmatpush1.msra.mxu0 0.0
        %359 = vmatprep.subr.mxu0 0.0
        %360 = vmatpush1.msra.mxu0 0.0
        %361 = vmatprep.subr.mxu0 0.0
        %362 = vmatpush1.msra.mxu0 0.0
        %363 = vmatprep.subr.mxu0 0.0
        %364 = vmatpush1.msra.mxu0 0.0
        %365 = vmatprep.subr.mxu0 0.0
        %366 = vmatpush1.msra.mxu0 0.0
        %367 = vmatprep.subr.mxu0 0.0
        %368 = vmatpush1.msra.mxu0 0.0
        %369 = vmatprep.subr.mxu0 0.0
        %370 = vmatpush1.msra.mxu0 0.0
        %371 = vmatprep.subr.mxu0 0.0
        %372 = vmatpush1.msra.mxu0 0.0
        %373 = vmatprep.subr.mxu0 0.0
        %374 = vmatpush1.msra.mxu0 0.0
        %375 = vmatprep.subr.mxu0 0.0
        %376 = vmatpush1.msra.mxu0 0.0
        %377 = vmatprep.subr.mxu0 0.0
        %378 = vmatpush1.msra.mxu0 0.0
        %379 = vmatprep.subr.mxu0 0.0
        %380 = vmatpush1.msra.mxu0 0.0
        %381 = vmatprep.subr.mxu0 0.0
        %382 = vmatpush1.msra.mxu0 0.0
        %383 = vmatprep.subr.mxu0 0.0
        %384 = vmatpush1.msra.mxu0 0.0
        %385 = vmatprep.subr.mxu0 0.0
        %386 = vmatpush1.msra.mxu0 0.0
        %387 = vmatprep.subr.mxu0 0.0
        %388 = vmatpush1.msra.mxu0 0.0
        %389 = vmatprep.subr.mxu0 0.0
        %390 = vmatpush1.msra.mxu0 0.0
        %391 = vmatprep.subr.mxu0 0.0
        %392 = vmatpush1.msra.mxu0 0.0
        %393 = vmatprep.subr.mxu0 0.0
        %394 = vmatpush1.msra.mxu0 0.0
        %395 = vmatprep.subr.mxu0 0.0
        %396 = vmatpush1.msra.mxu0 0.0
        %397 = vmatprep.subr.mxu0 0.0
        %398 = vmatpush1.msra.mxu0 0.0
        %399 = vmatprep.subr.mxu0 0.0
        %400 = vmatpush1.msra.mxu0 0.0
        %401 = vmatprep.subr.mxu0 0.0
        %402 = vmatpush1.msra.mxu0 0.0
        %403 = vmatprep.subr.mxu0 0.0
        %404 = vmatpush1.msra.mxu0 0.0
        %405 = vmatprep.subr.mxu0 0.0
        %406 = vmatpush1.msra.mxu0 0.0
        %407 = vmatprep.mubr.f32.mxu0 0.0
        %408 = vmatmul.mubr.f32.gmra.mrb[0].mxu0 %v336
        %v409 = vpop.f32.mrb[0].mxu0
        %v410 = vadd.f32 %v330, %v409
        %v411 = vpop.f32.mrb[0].mxu0
        %v412 = vadd.f32 %v330, %v411
        %413 = vdwg.mxu0
        %v416 = vcombine.low %v410, %v412
        %418 = vst [vmem:[#allocation2] sm:$0xff] %v416
        %v419 = vld [vmem:[#allocation2] sm:$0xf]
        %v422 = vunpack.c.l.s4 1966171168
        %v423 = vunpack.c.0.s8 %v422
        %v424 = vlaneseq
        %v425 = vshrl.u32 %v424, 7
        %v426 = vsub.s32 %v423, %v425
        %v427 = vrot.slane %v419, %v426
        %v428 = vcombine.high %v427, %v427
        %v430 = vunpack.c.l.s4 1966171168
        %v431 = vunpack.c.0.s8 %v430
        %v432 = vlaneseq
        %v433 = vshrl.u32 %v432, 7
        %v434 = vsub.s32 %v431, %v433
        %v435 = vrot.slane %v427, %v434
        %v437 = vunpack.c.l.s4 1966171168
        %v438 = vunpack.c.0.s8 %v437
        %v439 = vlaneseq
        %v440 = vshrl.u32 %v439, 7
        %v441 = vsub.s32 %v438, %v440
        %v442 = vrot.slane %v428, %v441
        %v443 = vcombine.high %v435, %v435
        %v444 = vcombine.high %v442, %v442
        %vm449 = vcmask 122880
        %450 = vst.msk [vmem:[#allocation3] sm:$0x1] %vm449, %v435
        %451 = vst.msk [vmem:[#allocation3 + $0x10] sm:$0x1] %vm449, %v442
        %452 = vst.msk [vmem:[#allocation3 + $0x20] sm:$0x1] %vm449, %v443
        %453 = vst.msk [vmem:[#allocation3 + $0x30] sm:$0x1] %vm449, %v444
        %v454 = vld [vmem:[#allocation2] sm:$0xf]
        %v457 = vunpack.c.l.s4 1966171168
        %v458 = vunpack.c.0.s8 %v457
        %v459 = vlaneseq
        %v460 = vshrl.u32 %v459, 7
        %v461 = vsub.s32 %v458, %v460
        %v462 = vrot.slane %v454, %v461
        %v463 = vcombine.high %v462, %v462
        %v465 = vunpack.c.l.s4 1966171168
        %v466 = vunpack.c.0.s8 %v465
        %v467 = vlaneseq
        %v468 = vshrl.u32 %v467, 7
        %v469 = vsub.s32 %v466, %v468
        %v470 = vrot.slane %v462, %v469
        %v472 = vunpack.c.l.s4 1966171168
        %v473 = vunpack.c.0.s8 %v472
        %v474 = vlaneseq
        %v475 = vshrl.u32 %v474, 7
        %v476 = vsub.s32 %v473, %v475
        %v477 = vrot.slane %v463, %v476
        %v478 = vcombine.high %v470, %v470
        %v479 = vcombine.high %v477, %v477
        %v480 = vlaneseq
        %v481 = vshrl.u32 %v480, 7
        %v482 = vsub.s32 0, %v481
        %v483 = vrot.slane %v470, %v482
        %v484 = vlaneseq
        %v485 = vshrl.u32 %v484, 7
        %v486 = vsub.s32 0, %v485
        %v487 = vrot.slane %v477, %v486
        %v488 = vlaneseq
        %v489 = vshrl.u32 %v488, 7
        %v490 = vsub.s32 0, %v489
        %v491 = vrot.slane %v478, %v490
        %v492 = vlaneseq
        %v493 = vshrl.u32 %v492, 7
        %v494 = vsub.s32 0, %v493
        %v495 = vrot.slane %v479, %v494
        %496 = vrot.lane.b32.xlu0 %v483, 112
        %v497 = vpop.permute.xlu0 %496
        %498 = vrot.lane.b32.xlu0 %v487, 112
        %v499 = vpop.permute.xlu0 %498
        %500 = vrot.lane.b32.xlu0 %v491, 112
        %v501 = vpop.permute.xlu0 %500
        %502 = vrot.lane.b32.xlu0 %v495, 112
        %v503 = vpop.permute.xlu0 %502
        %508 = vst.msk [vmem:[#allocation3 + $0x1] sm:$0x1] %vm449, %v497
        %509 = vst.msk [vmem:[#allocation3 + $0x11] sm:$0x1] %vm449, %v499
        %510 = vst.msk [vmem:[#allocation3 + $0x21] sm:$0x1] %vm449, %v501
        %511 = vst.msk [vmem:[#allocation3 + $0x31] sm:$0x1] %vm449, %v503
        %v512 = vld [vmem:[#allocation2] sm:$0xf]
        %v515 = vunpack.c.l.s4 1966171168
        %v516 = vunpack.c.0.s8 %v515
        %v517 = vlaneseq
        %v518 = vshrl.u32 %v517, 7
        %v519 = vsub.s32 %v516, %v518
        %v520 = vrot.slane %v512, %v519
        %v521 = vcombine.high %v520, %v520
        %v523 = vunpack.c.l.s4 1966171168
        %v524 = vunpack.c.0.s8 %v523
        %v525 = vlaneseq
        %v526 = vshrl.u32 %v525, 7
        %v527 = vsub.s32 %v524, %v526
        %v528 = vrot.slane %v520, %v527
        %v530 = vunpack.c.l.s4 1966171168
        %v531 = vunpack.c.0.s8 %v530
        %v532 = vlaneseq
        %v533 = vshrl.u32 %v532, 7
        %v534 = vsub.s32 %v531, %v533
        %v535 = vrot.slane %v521, %v534
        %v536 = vcombine.high %v528, %v528
        %v537 = vcombine.high %v535, %v535
        %v538 = vlaneseq
        %v539 = vshrl.u32 %v538, 7
        %v540 = vsub.s32 0, %v539
        %v541 = vrot.slane %v528, %v540
        %v542 = vlaneseq
        %v543 = vshrl.u32 %v542, 7
        %v544 = vsub.s32 0, %v543
        %v545 = vrot.slane %v535, %v544
        %v546 = vlaneseq
        %v547 = vshrl.u32 %v546, 7
        %v548 = vsub.s32 0, %v547
        %v549 = vrot.slane %v536, %v548
        %v550 = vlaneseq
        %v551 = vshrl.u32 %v550, 7
        %v552 = vsub.s32 0, %v551
        %v553 = vrot.slane %v537, %v552
        %554 = vrot.lane.b32.xlu0 %v541, 96
        %v555 = vpop.permute.xlu0 %554
        %556 = vrot.lane.b32.xlu0 %v545, 96
        %v557 = vpop.permute.xlu0 %556
        %558 = vrot.lane.b32.xlu0 %v549, 96
        %v559 = vpop.permute.xlu0 %558
        %560 = vrot.lane.b32.xlu0 %v553, 96
        %v561 = vpop.permute.xlu0 %560
        %566 = vst.msk [vmem:[#allocation3 + $0x2] sm:$0x1] %vm449, %v555
        %567 = vst.msk [vmem:[#allocation3 + $0x12] sm:$0x1] %vm449, %v557
        %568 = vst.msk [vmem:[#allocation3 + $0x22] sm:$0x1] %vm449, %v559
        %569 = vst.msk [vmem:[#allocation3 + $0x32] sm:$0x1] %vm449, %v561
        %v570 = vld [vmem:[#allocation2] sm:$0xf]
        %v573 = vunpack.c.l.s4 1966171168
        %v574 = vunpack.c.0.s8 %v573
        %v575 = vlaneseq
        %v576 = vshrl.u32 %v575, 7
        %v577 = vsub.s32 %v574, %v576
        %v578 = vrot.slane %v570, %v577
        %v579 = vcombine.high %v578, %v578
        %v581 = vunpack.c.l.s4 1966171168
        %v582 = vunpack.c.0.s8 %v581
        %v583 = vlaneseq
        %v584 = vshrl.u32 %v583, 7
        %v585 = vsub.s32 %v582, %v584
        %v586 = vrot.slane %v578, %v585
        %v588 = vunpack.c.l.s4 1966171168
        %v589 = vunpack.c.0.s8 %v588
        %v590 = vlaneseq
        %v591 = vshrl.u32 %v590, 7
        %v592 = vsub.s32 %v589, %v591
        %v593 = vrot.slane %v579, %v592
        %v594 = vcombine.high %v586, %v586
        %v595 = vcombine.high %v593, %v593
        %v596 = vlaneseq
        %v597 = vshrl.u32 %v596, 7
        %v598 = vsub.s32 0, %v597
        %v599 = vrot.slane %v586, %v598
        %v600 = vlaneseq
        %v601 = vshrl.u32 %v600, 7
        %v602 = vsub.s32 0, %v601
        %v603 = vrot.slane %v593, %v602
        %v604 = vlaneseq
        %v605 = vshrl.u32 %v604, 7
        %v606 = vsub.s32 0, %v605
        %v607 = vrot.slane %v594, %v606
        %v608 = vlaneseq
        %v609 = vshrl.u32 %v608, 7
        %v610 = vsub.s32 0, %v609
        %v611 = vrot.slane %v595, %v610
        %612 = vrot.lane.b32.xlu0 %v599, 80
        %v613 = vpop.permute.xlu0 %612
        %614 = vrot.lane.b32.xlu0 %v603, 80
        %v615 = vpop.permute.xlu0 %614
        %616 = vrot.lane.b32.xlu0 %v607, 80
        %v617 = vpop.permute.xlu0 %616
        %618 = vrot.lane.b32.xlu0 %v611, 80
        %v619 = vpop.permute.xlu0 %618
        %624 = vst.msk [vmem:[#allocation3 + $0x3] sm:$0x1] %vm449, %v613
        %625 = vst.msk [vmem:[#allocation3 + $0x13] sm:$0x1] %vm449, %v615
        %626 = vst.msk [vmem:[#allocation3 + $0x23] sm:$0x1] %vm449, %v617
        %627 = vst.msk [vmem:[#allocation3 + $0x33] sm:$0x1] %vm449, %v619
        %v628 = vld [vmem:[#allocation2] sm:$0xf]
        %v631 = vunpack.c.l.s4 1966171168
        %v632 = vunpack.c.0.s8 %v631
        %v633 = vlaneseq
        %v634 = vshrl.u32 %v633, 7
        %v635 = vsub.s32 %v632, %v634
        %v636 = vrot.slane %v628, %v635
        %v637 = vcombine.high %v636, %v636
        %v639 = vunpack.c.l.s4 1966171168
        %v640 = vunpack.c.0.s8 %v639
        %v641 = vlaneseq
        %v642 = vshrl.u32 %v641, 7
        %v643 = vsub.s32 %v640, %v642
        %v644 = vrot.slane %v636, %v643
        %v646 = vunpack.c.l.s4 1966171168
        %v647 = vunpack.c.0.s8 %v646
        %v648 = vlaneseq
        %v649 = vshrl.u32 %v648, 7
        %v650 = vsub.s32 %v647, %v649
        %v651 = vrot.slane %v637, %v650
        %v652 = vcombine.high %v644, %v644
        %v653 = vcombine.high %v651, %v651
        %v654 = vlaneseq
        %v655 = vshrl.u32 %v654, 7
        %v656 = vsub.s32 0, %v655
        %v657 = vrot.slane %v644, %v656
        %v658 = vlaneseq
        %v659 = vshrl.u32 %v658, 7
        %v660 = vsub.s32 0, %v659
        %v661 = vrot.slane %v651, %v660
        %v662 = vlaneseq
        %v663 = vshrl.u32 %v662, 7
        %v664 = vsub.s32 0, %v663
        %v665 = vrot.slane %v652, %v664
        %v666 = vlaneseq
        %v667 = vshrl.u32 %v666, 7
        %v668 = vsub.s32 0, %v667
        %v669 = vrot.slane %v653, %v668
        %670 = vrot.lane.b32.xlu0 %v657, 64
        %v671 = vpop.permute.xlu0 %670
        %672 = vrot.lane.b32.xlu0 %v661, 64
        %v673 = vpop.permute.xlu0 %672
        %674 = vrot.lane.b32.xlu0 %v665, 64
        %v675 = vpop.permute.xlu0 %674
        %676 = vrot.lane.b32.xlu0 %v669, 64
        %v677 = vpop.permute.xlu0 %676
        %682 = vst.msk [vmem:[#allocation3 + $0x4] sm:$0x1] %vm449, %v671
        %683 = vst.msk [vmem:[#allocation3 + $0x14] sm:$0x1] %vm449, %v673
        %684 = vst.msk [vmem:[#allocation3 + $0x24] sm:$0x1] %vm449, %v675
        %685 = vst.msk [vmem:[#allocation3 + $0x34] sm:$0x1] %vm449, %v677
        %v686 = vld [vmem:[#allocation2] sm:$0xf]
        %v689 = vunpack.c.l.s4 1966171168
        %v690 = vunpack.c.0.s8 %v689
        %v691 = vlaneseq
        %v692 = vshrl.u32 %v691, 7
        %v693 = vsub.s32 %v690, %v692
        %v694 = vrot.slane %v686, %v693
        %v695 = vcombine.high %v694, %v694
        %v697 = vunpack.c.l.s4 1966171168
        %v698 = vunpack.c.0.s8 %v697
        %v699 = vlaneseq
        %v700 = vshrl.u32 %v699, 7
        %v701 = vsub.s32 %v698, %v700
        %v702 = vrot.slane %v694, %v701
        %v704 = vunpack.c.l.s4 1966171168
        %v705 = vunpack.c.0.s8 %v704
        %v706 = vlaneseq
        %v707 = vshrl.u32 %v706, 7
        %v708 = vsub.s32 %v705, %v707
        %v709 = vrot.slane %v695, %v708
        %v710 = vcombine.high %v702, %v702
        %v711 = vcombine.high %v709, %v709
        %v712 = vlaneseq
        %v713 = vshrl.u32 %v712, 7
        %v714 = vsub.s32 0, %v713
        %v715 = vrot.slane %v702, %v714
        %v716 = vlaneseq
        %v717 = vshrl.u32 %v716, 7
        %v718 = vsub.s32 0, %v717
        %v719 = vrot.slane %v709, %v718
        %v720 = vlaneseq
        %v721 = vshrl.u32 %v720, 7
        %v722 = vsub.s32 0, %v721
        %v723 = vrot.slane %v710, %v722
        %v724 = vlaneseq
        %v725 = vshrl.u32 %v724, 7
        %v726 = vsub.s32 0, %v725
        %v727 = vrot.slane %v711, %v726
        %728 = vrot.lane.b32.xlu0 %v715, 48
        %v729 = vpop.permute.xlu0 %728
        %730 = vrot.lane.b32.xlu0 %v719, 48
        %v731 = vpop.permute.xlu0 %730
        %732 = vrot.lane.b32.xlu0 %v723, 48
        %v733 = vpop.permute.xlu0 %732
        %734 = vrot.lane.b32.xlu0 %v727, 48
        %v735 = vpop.permute.xlu0 %734
        %740 = vst.msk [vmem:[#allocation3 + $0x5] sm:$0x1] %vm449, %v729
        %741 = vst.msk [vmem:[#allocation3 + $0x15] sm:$0x1] %vm449, %v731
        %742 = vst.msk [vmem:[#allocation3 + $0x25] sm:$0x1] %vm449, %v733
        %743 = vst.msk [vmem:[#allocation3 + $0x35] sm:$0x1] %vm449, %v735
        %v744 = vld [vmem:[#allocation2] sm:$0xf]
        %v747 = vunpack.c.l.s4 1966171168
        %v748 = vunpack.c.0.s8 %v747
        %v749 = vlaneseq
        %v750 = vshrl.u32 %v749, 7
        %v751 = vsub.s32 %v748, %v750
        %v752 = vrot.slane %v744, %v751
        %v753 = vcombine.high %v752, %v752
        %v755 = vunpack.c.l.s4 1966171168
        %v756 = vunpack.c.0.s8 %v755
        %v757 = vlaneseq
        %v758 = vshrl.u32 %v757, 7
        %v759 = vsub.s32 %v756, %v758
        %v760 = vrot.slane %v752, %v759
        %v762 = vunpack.c.l.s4 1966171168
        %v763 = vunpack.c.0.s8 %v762
        %v764 = vlaneseq
        %v765 = vshrl.u32 %v764, 7
        %v766 = vsub.s32 %v763, %v765
        %v767 = vrot.slane %v753, %v766
        %v768 = vcombine.high %v760, %v760
        %v769 = vcombine.high %v767, %v767
        %v770 = vlaneseq
        %v771 = vshrl.u32 %v770, 7
        %v772 = vsub.s32 0, %v771
        %v773 = vrot.slane %v760, %v772
        %v774 = vlaneseq
        %v775 = vshrl.u32 %v774, 7
        %v776 = vsub.s32 0, %v775
        %v777 = vrot.slane %v767, %v776
        %v778 = vlaneseq
        %v779 = vshrl.u32 %v778, 7
        %v780 = vsub.s32 0, %v779
        %v781 = vrot.slane %v768, %v780
        %v782 = vlaneseq
        %v783 = vshrl.u32 %v782, 7
        %v784 = vsub.s32 0, %v783
        %v785 = vrot.slane %v769, %v784
        %786 = vrot.lane.b32.xlu0 %v773, 32
        %v787 = vpop.permute.xlu0 %786
        %788 = vrot.lane.b32.xlu0 %v777, 32
        %v789 = vpop.permute.xlu0 %788
        %790 = vrot.lane.b32.xlu0 %v781, 32
        %v791 = vpop.permute.xlu0 %790
        %792 = vrot.lane.b32.xlu0 %v785, 32
        %v793 = vpop.permute.xlu0 %792
        %798 = vst.msk [vmem:[#allocation3 + $0x6] sm:$0x1] %vm449, %v787
        %799 = vst.msk [vmem:[#allocation3 + $0x16] sm:$0x1] %vm449, %v789
        %800 = vst.msk [vmem:[#allocation3 + $0x26] sm:$0x1] %vm449, %v791
        %801 = vst.msk [vmem:[#allocation3 + $0x36] sm:$0x1] %vm449, %v793
        %v802 = vld [vmem:[#allocation2] sm:$0xf]
        %v805 = vunpack.c.l.s4 1966171168
        %v806 = vunpack.c.0.s8 %v805
        %v807 = vlaneseq
        %v808 = vshrl.u32 %v807, 7
        %v809 = vsub.s32 %v806, %v808
        %v810 = vrot.slane %v802, %v809
        %v811 = vcombine.high %v810, %v810
        %v813 = vunpack.c.l.s4 1966171168
        %v814 = vunpack.c.0.s8 %v813
        %v815 = vlaneseq
        %v816 = vshrl.u32 %v815, 7
        %v817 = vsub.s32 %v814, %v816
        %v818 = vrot.slane %v810, %v817
        %v820 = vunpack.c.l.s4 1966171168
        %v821 = vunpack.c.0.s8 %v820
        %v822 = vlaneseq
        %v823 = vshrl.u32 %v822, 7
        %v824 = vsub.s32 %v821, %v823
        %v825 = vrot.slane %v811, %v824
        %v826 = vcombine.high %v818, %v818
        %v827 = vcombine.high %v825, %v825
        %v828 = vlaneseq
        %v829 = vshrl.u32 %v828, 7
        %v830 = vsub.s32 0, %v829
        %v831 = vrot.slane %v818, %v830
        %v832 = vlaneseq
        %v833 = vshrl.u32 %v832, 7
        %v834 = vsub.s32 0, %v833
        %v835 = vrot.slane %v825, %v834
        %v836 = vlaneseq
        %v837 = vshrl.u32 %v836, 7
        %v838 = vsub.s32 0, %v837
        %v839 = vrot.slane %v826, %v838
        %v840 = vlaneseq
        %v841 = vshrl.u32 %v840, 7
        %v842 = vsub.s32 0, %v841
        %v843 = vrot.slane %v827, %v842
        %844 = vrot.lane.b32.xlu0 %v831, 16
        %v845 = vpop.permute.xlu0 %844
        %846 = vrot.lane.b32.xlu0 %v835, 16
        %v847 = vpop.permute.xlu0 %846
        %848 = vrot.lane.b32.xlu0 %v839, 16
        %v849 = vpop.permute.xlu0 %848
        %850 = vrot.lane.b32.xlu0 %v843, 16
        %v851 = vpop.permute.xlu0 %850
        %856 = vst.msk [vmem:[#allocation3 + $0x7] sm:$0x1] %vm449, %v845
        %857 = vst.msk [vmem:[#allocation3 + $0x17] sm:$0x1] %vm449, %v847
        %858 = vst.msk [vmem:[#allocation3 + $0x27] sm:$0x1] %vm449, %v849
        %859 = vst.msk [vmem:[#allocation3 + $0x37] sm:$0x1] %vm449, %v851
        %v860 = vld [vmem:[#allocation2 + $0x4] sm:$0xf]
        %v863 = vunpack.c.l.s4 1966171168
        %v864 = vunpack.c.0.s8 %v863
        %v865 = vlaneseq
        %v866 = vshrl.u32 %v865, 7
        %v867 = vsub.s32 %v864, %v866
        %v868 = vrot.slane %v860, %v867
        %v869 = vcombine.high %v868, %v868
        %v871 = vunpack.c.l.s4 1966171168
        %v872 = vunpack.c.0.s8 %v871
        %v873 = vlaneseq
        %v874 = vshrl.u32 %v873, 7
        %v875 = vsub.s32 %v872, %v874
        %v876 = vrot.slane %v868, %v875
        %v878 = vunpack.c.l.s4 1966171168
        %v879 = vunpack.c.0.s8 %v878
        %v880 = vlaneseq
        %v881 = vshrl.u32 %v880, 7
        %v882 = vsub.s32 %v879, %v881
        %v883 = vrot.slane %v869, %v882
        %v884 = vcombine.high %v876, %v876
        %v885 = vcombine.high %v883, %v883
        %890 = vst.msk [vmem:[#allocation3 + $0x8] sm:$0x1] %vm449, %v876
        %891 = vst.msk [vmem:[#allocation3 + $0x18] sm:$0x1] %vm449, %v883
        %892 = vst.msk [vmem:[#allocation3 + $0x28] sm:$0x1] %vm449, %v884
        %893 = vst.msk [vmem:[#allocation3 + $0x38] sm:$0x1] %vm449, %v885
        %v894 = vld [vmem:[#allocation2 + $0x4] sm:$0xf]
        %v897 = vunpack.c.l.s4 1966171168
        %v898 = vunpack.c.0.s8 %v897
        %v899 = vlaneseq
        %v900 = vshrl.u32 %v899, 7
        %v901 = vsub.s32 %v898, %v900
        %v902 = vrot.slane %v894, %v901
        %v903 = vcombine.high %v902, %v902
        %v905 = vunpack.c.l.s4 1966171168
        %v906 = vunpack.c.0.s8 %v905
        %v907 = vlaneseq
        %v908 = vshrl.u32 %v907, 7
        %v909 = vsub.s32 %v906, %v908
        %v910 = vrot.slane %v902, %v909
        %v912 = vunpack.c.l.s4 1966171168
        %v913 = vunpack.c.0.s8 %v912
        %v914 = vlaneseq
        %v915 = vshrl.u32 %v914, 7
        %v916 = vsub.s32 %v913, %v915
        %v917 = vrot.slane %v903, %v916
        %v918 = vcombine.high %v910, %v910
        %v919 = vcombine.high %v917, %v917
        %v920 = vlaneseq
        %v921 = vshrl.u32 %v920, 7
        %v922 = vsub.s32 0, %v921
        %v923 = vrot.slane %v910, %v922
        %v924 = vlaneseq
        %v925 = vshrl.u32 %v924, 7
        %v926 = vsub.s32 0, %v925
        %v927 = vrot.slane %v917, %v926
        %v928 = vlaneseq
        %v929 = vshrl.u32 %v928, 7
        %v930 = vsub.s32 0, %v929
        %v931 = vrot.slane %v918, %v930
        %v932 = vlaneseq
        %v933 = vshrl.u32 %v932, 7
        %v934 = vsub.s32 0, %v933
        %v935 = vrot.slane %v919, %v934
        %936 = vrot.lane.b32.xlu0 %v923, 112
        %v937 = vpop.permute.xlu0 %936
        %938 = vrot.lane.b32.xlu0 %v927, 112
        %v939 = vpop.permute.xlu0 %938
        %940 = vrot.lane.b32.xlu0 %v931, 112
        %v941 = vpop.permute.xlu0 %940
        %942 = vrot.lane.b32.xlu0 %v935, 112
        %v943 = vpop.permute.xlu0 %942
        %948 = vst.msk [vmem:[#allocation3 + $0x9] sm:$0x1] %vm449, %v937
        %949 = vst.msk [vmem:[#allocation3 + $0x19] sm:$0x1] %vm449, %v939
        %950 = vst.msk [vmem:[#allocation3 + $0x29] sm:$0x1] %vm449, %v941
        %951 = vst.msk [vmem:[#allocation3 + $0x39] sm:$0x1] %vm449, %v943
        %v952 = vld [vmem:[#allocation2 + $0x4] sm:$0xf]
        %v955 = vunpack.c.l.s4 1966171168
        %v956 = vunpack.c.0.s8 %v955
        %v957 = vlaneseq
        %v958 = vshrl.u32 %v957, 7
        %v959 = vsub.s32 %v956, %v958
        %v960 = vrot.slane %v952, %v959
        %v961 = vcombine.high %v960, %v960
        %v963 = vunpack.c.l.s4 1966171168
        %v964 = vunpack.c.0.s8 %v963
        %v965 = vlaneseq
        %v966 = vshrl.u32 %v965, 7
        %v967 = vsub.s32 %v964, %v966
        %v968 = vrot.slane %v960, %v967
        %v970 = vunpack.c.l.s4 1966171168
        %v971 = vunpack.c.0.s8 %v970
        %v972 = vlaneseq
        %v973 = vshrl.u32 %v972, 7
        %v974 = vsub.s32 %v971, %v973
        %v975 = vrot.slane %v961, %v974
        %v976 = vcombine.high %v968, %v968
        %v977 = vcombine.high %v975, %v975
        %v978 = vlaneseq
        %v979 = vshrl.u32 %v978, 7
        %v980 = vsub.s32 0, %v979
        %v981 = vrot.slane %v968, %v980
        %v982 = vlaneseq
        %v983 = vshrl.u32 %v982, 7
        %v984 = vsub.s32 0, %v983
        %v985 = vrot.slane %v975, %v984
        %v986 = vlaneseq
        %v987 = vshrl.u32 %v986, 7
        %v988 = vsub.s32 0, %v987
        %v989 = vrot.slane %v976, %v988
        %v990 = vlaneseq
        %v991 = vshrl.u32 %v990, 7
        %v992 = vsub.s32 0, %v991
        %v993 = vrot.slane %v977, %v992
        %994 = vrot.lane.b32.xlu0 %v981, 96
        %v995 = vpop.permute.xlu0 %994
        %996 = vrot.lane.b32.xlu0 %v985, 96
        %v997 = vpop.permute.xlu0 %996
        %998 = vrot.lane.b32.xlu0 %v989, 96
        %v999 = vpop.permute.xlu0 %998
        %1000 = vrot.lane.b32.xlu0 %v993, 96
        %v1001 = vpop.permute.xlu0 %1000
        %1006 = vst.msk [vmem:[#allocation3 + $0xa] sm:$0x1] %vm449, %v995
        %1007 = vst.msk [vmem:[#allocation3 + $0x1a] sm:$0x1] %vm449, %v997
        %1008 = vst.msk [vmem:[#allocation3 + $0x2a] sm:$0x1] %vm449, %v999
        %1009 = vst.msk [vmem:[#allocation3 + $0x3a] sm:$0x1] %vm449, %v1001
        %v1010 = vld [vmem:[#allocation2 + $0x4] sm:$0xf]
        %v1013 = vunpack.c.l.s4 1966171168
        %v1014 = vunpack.c.0.s8 %v1013
        %v1015 = vlaneseq
        %v1016 = vshrl.u32 %v1015, 7
        %v1017 = vsub.s32 %v1014, %v1016
        %v1018 = vrot.slane %v1010, %v1017
        %v1019 = vcombine.high %v1018, %v1018
        %v1021 = vunpack.c.l.s4 1966171168
        %v1022 = vunpack.c.0.s8 %v1021
        %v1023 = vlaneseq
        %v1024 = vshrl.u32 %v1023, 7
        %v1025 = vsub.s32 %v1022, %v1024
        %v1026 = vrot.slane %v1018, %v1025
        %v1028 = vunpack.c.l.s4 1966171168
        %v1029 = vunpack.c.0.s8 %v1028
        %v1030 = vlaneseq
        %v1031 = vshrl.u32 %v1030, 7
        %v1032 = vsub.s32 %v1029, %v1031
        %v1033 = vrot.slane %v1019, %v1032
        %v1034 = vcombine.high %v1026, %v1026
        %v1035 = vcombine.high %v1033, %v1033
        %v1036 = vlaneseq
        %v1037 = vshrl.u32 %v1036, 7
        %v1038 = vsub.s32 0, %v1037
        %v1039 = vrot.slane %v1026, %v1038
        %v1040 = vlaneseq
        %v1041 = vshrl.u32 %v1040, 7
        %v1042 = vsub.s32 0, %v1041
        %v1043 = vrot.slane %v1033, %v1042
        %v1044 = vlaneseq
        %v1045 = vshrl.u32 %v1044, 7
        %v1046 = vsub.s32 0, %v1045
        %v1047 = vrot.slane %v1034, %v1046
        %v1048 = vlaneseq
        %v1049 = vshrl.u32 %v1048, 7
        %v1050 = vsub.s32 0, %v1049
        %v1051 = vrot.slane %v1035, %v1050
        %1052 = vrot.lane.b32.xlu0 %v1039, 80
        %v1053 = vpop.permute.xlu0 %1052
        %1054 = vrot.lane.b32.xlu0 %v1043, 80
        %v1055 = vpop.permute.xlu0 %1054
        %1056 = vrot.lane.b32.xlu0 %v1047, 80
        %v1057 = vpop.permute.xlu0 %1056
        %1058 = vrot.lane.b32.xlu0 %v1051, 80
        %v1059 = vpop.permute.xlu0 %1058
        %1064 = vst.msk [vmem:[#allocation3 + $0xb] sm:$0x1] %vm449, %v1053
        %1065 = vst.msk [vmem:[#allocation3 + $0x1b] sm:$0x1] %vm449, %v1055
        %1066 = vst.msk [vmem:[#allocation3 + $0x2b] sm:$0x1] %vm449, %v1057
        %1067 = vst.msk [vmem:[#allocation3 + $0x3b] sm:$0x1] %vm449, %v1059
        %v1068 = vld [vmem:[#allocation2 + $0x4] sm:$0xf]
        %v1071 = vunpack.c.l.s4 1966171168
        %v1072 = vunpack.c.0.s8 %v1071
        %v1073 = vlaneseq
        %v1074 = vshrl.u32 %v1073, 7
        %v1075 = vsub.s32 %v1072, %v1074
        %v1076 = vrot.slane %v1068, %v1075
        %v1077 = vcombine.high %v1076, %v1076
        %v1079 = vunpack.c.l.s4 1966171168
        %v1080 = vunpack.c.0.s8 %v1079
        %v1081 = vlaneseq
        %v1082 = vshrl.u32 %v1081, 7
        %v1083 = vsub.s32 %v1080, %v1082
        %v1084 = vrot.slane %v1076, %v1083
        %v1086 = vunpack.c.l.s4 1966171168
        %v1087 = vunpack.c.0.s8 %v1086
        %v1088 = vlaneseq
        %v1089 = vshrl.u32 %v1088, 7
        %v1090 = vsub.s32 %v1087, %v1089
        %v1091 = vrot.slane %v1077, %v1090
        %v1092 = vcombine.high %v1084, %v1084
        %v1093 = vcombine.high %v1091, %v1091
        %v1094 = vlaneseq
        %v1095 = vshrl.u32 %v1094, 7
        %v1096 = vsub.s32 0, %v1095
        %v1097 = vrot.slane %v1084, %v1096
        %v1098 = vlaneseq
        %v1099 = vshrl.u32 %v1098, 7
        %v1100 = vsub.s32 0, %v1099
        %v1101 = vrot.slane %v1091, %v1100
        %v1102 = vlaneseq
        %v1103 = vshrl.u32 %v1102, 7
        %v1104 = vsub.s32 0, %v1103
        %v1105 = vrot.slane %v1092, %v1104
        %v1106 = vlaneseq
        %v1107 = vshrl.u32 %v1106, 7
        %v1108 = vsub.s32 0, %v1107
        %v1109 = vrot.slane %v1093, %v1108
        %1110 = vrot.lane.b32.xlu0 %v1097, 64
        %v1111 = vpop.permute.xlu0 %1110
        %1112 = vrot.lane.b32.xlu0 %v1101, 64
        %v1113 = vpop.permute.xlu0 %1112
        %1114 = vrot.lane.b32.xlu0 %v1105, 64
        %v1115 = vpop.permute.xlu0 %1114
        %1116 = vrot.lane.b32.xlu0 %v1109, 64
        %v1117 = vpop.permute.xlu0 %1116
        %1122 = vst.msk [vmem:[#allocation3 + $0xc] sm:$0x1] %vm449, %v1111
        %1123 = vst.msk [vmem:[#allocation3 + $0x1c] sm:$0x1] %vm449, %v1113
        %1124 = vst.msk [vmem:[#allocation3 + $0x2c] sm:$0x1] %vm449, %v1115
        %1125 = vst.msk [vmem:[#allocation3 + $0x3c] sm:$0x1] %vm449, %v1117
        %v1126 = vld [vmem:[#allocation2 + $0x4] sm:$0xf]
        %v1129 = vunpack.c.l.s4 1966171168
        %v1130 = vunpack.c.0.s8 %v1129
        %v1131 = vlaneseq
        %v1132 = vshrl.u32 %v1131, 7
        %v1133 = vsub.s32 %v1130, %v1132
        %v1134 = vrot.slane %v1126, %v1133
        %v1135 = vcombine.high %v1134, %v1134
        %v1137 = vunpack.c.l.s4 1966171168
        %v1138 = vunpack.c.0.s8 %v1137
        %v1139 = vlaneseq
        %v1140 = vshrl.u32 %v1139, 7
        %v1141 = vsub.s32 %v1138, %v1140
        %v1142 = vrot.slane %v1134, %v1141
        %v1144 = vunpack.c.l.s4 1966171168
        %v1145 = vunpack.c.0.s8 %v1144
        %v1146 = vlaneseq
        %v1147 = vshrl.u32 %v1146, 7
        %v1148 = vsub.s32 %v1145, %v1147
        %v1149 = vrot.slane %v1135, %v1148
        %v1150 = vcombine.high %v1142, %v1142
        %v1151 = vcombine.high %v1149, %v1149
        %v1152 = vlaneseq
        %v1153 = vshrl.u32 %v1152, 7
        %v1154 = vsub.s32 0, %v1153
        %v1155 = vrot.slane %v1142, %v1154
        %v1156 = vlaneseq
        %v1157 = vshrl.u32 %v1156, 7
        %v1158 = vsub.s32 0, %v1157
        %v1159 = vrot.slane %v1149, %v1158
        %v1160 = vlaneseq
        %v1161 = vshrl.u32 %v1160, 7
        %v1162 = vsub.s32 0, %v1161
        %v1163 = vrot.slane %v1150, %v1162
        %v1164 = vlaneseq
        %v1165 = vshrl.u32 %v1164, 7
        %v1166 = vsub.s32 0, %v1165
        %v1167 = vrot.slane %v1151, %v1166
        %1168 = vrot.lane.b32.xlu0 %v1155, 48
        %v1169 = vpop.permute.xlu0 %1168
        %1170 = vrot.lane.b32.xlu0 %v1159, 48
        %v1171 = vpop.permute.xlu0 %1170
        %1172 = vrot.lane.b32.xlu0 %v1163, 48
        %v1173 = vpop.permute.xlu0 %1172
        %1174 = vrot.lane.b32.xlu0 %v1167, 48
        %v1175 = vpop.permute.xlu0 %1174
        %1180 = vst.msk [vmem:[#allocation3 + $0xd] sm:$0x1] %vm449, %v1169
        %1181 = vst.msk [vmem:[#allocation3 + $0x1d] sm:$0x1] %vm449, %v1171
        %1182 = vst.msk [vmem:[#allocation3 + $0x2d] sm:$0x1] %vm449, %v1173
        %1183 = vst.msk [vmem:[#allocation3 + $0x3d] sm:$0x1] %vm449, %v1175
        %v1184 = vld [vmem:[#allocation2 + $0x4] sm:$0xf]
        %v1187 = vunpack.c.l.s4 1966171168
        %v1188 = vunpack.c.0.s8 %v1187
        %v1189 = vlaneseq
        %v1190 = vshrl.u32 %v1189, 7
        %v1191 = vsub.s32 %v1188, %v1190
        %v1192 = vrot.slane %v1184, %v1191
        %v1193 = vcombine.high %v1192, %v1192
        %v1195 = vunpack.c.l.s4 1966171168
        %v1196 = vunpack.c.0.s8 %v1195
        %v1197 = vlaneseq
        %v1198 = vshrl.u32 %v1197, 7
        %v1199 = vsub.s32 %v1196, %v1198
        %v1200 = vrot.slane %v1192, %v1199
        %v1202 = vunpack.c.l.s4 1966171168
        %v1203 = vunpack.c.0.s8 %v1202
        %v1204 = vlaneseq
        %v1205 = vshrl.u32 %v1204, 7
        %v1206 = vsub.s32 %v1203, %v1205
        %v1207 = vrot.slane %v1193, %v1206
        %v1208 = vcombine.high %v1200, %v1200
        %v1209 = vcombine.high %v1207, %v1207
        %v1210 = vlaneseq
        %v1211 = vshrl.u32 %v1210, 7
        %v1212 = vsub.s32 0, %v1211
        %v1213 = vrot.slane %v1200, %v1212
        %v1214 = vlaneseq
        %v1215 = vshrl.u32 %v1214, 7
        %v1216 = vsub.s32 0, %v1215
        %v1217 = vrot.slane %v1207, %v1216
        %v1218 = vlaneseq
        %v1219 = vshrl.u32 %v1218, 7
        %v1220 = vsub.s32 0, %v1219
        %v1221 = vrot.slane %v1208, %v1220
        %v1222 = vlaneseq
        %v1223 = vshrl.u32 %v1222, 7
        %v1224 = vsub.s32 0, %v1223
        %v1225 = vrot.slane %v1209, %v1224
        %1226 = vrot.lane.b32.xlu0 %v1213, 32
        %v1227 = vpop.permute.xlu0 %1226
        %1228 = vrot.lane.b32.xlu0 %v1217, 32
        %v1229 = vpop.permute.xlu0 %1228
        %1230 = vrot.lane.b32.xlu0 %v1221, 32
        %v1231 = vpop.permute.xlu0 %1230
        %1232 = vrot.lane.b32.xlu0 %v1225, 32
        %v1233 = vpop.permute.xlu0 %1232
        %1238 = vst.msk [vmem:[#allocation3 + $0xe] sm:$0x1] %vm449, %v1227
        %1239 = vst.msk [vmem:[#allocation3 + $0x1e] sm:$0x1] %vm449, %v1229
        %1240 = vst.msk [vmem:[#allocation3 + $0x2e] sm:$0x1] %vm449, %v1231
        %1241 = vst.msk [vmem:[#allocation3 + $0x3e] sm:$0x1] %vm449, %v1233
        %v1242 = vld [vmem:[#allocation2 + $0x4] sm:$0xf]
        %v1245 = vunpack.c.l.s4 1966171168
        %v1246 = vunpack.c.0.s8 %v1245
        %v1247 = vlaneseq
        %v1248 = vshrl.u32 %v1247, 7
        %v1249 = vsub.s32 %v1246, %v1248
        %v1250 = vrot.slane %v1242, %v1249
        %v1251 = vcombine.high %v1250, %v1250
        %v1253 = vunpack.c.l.s4 1966171168
        %v1254 = vunpack.c.0.s8 %v1253
        %v1255 = vlaneseq
        %v1256 = vshrl.u32 %v1255, 7
        %v1257 = vsub.s32 %v1254, %v1256
        %v1258 = vrot.slane %v1250, %v1257
        %v1260 = vunpack.c.l.s4 1966171168
        %v1261 = vunpack.c.0.s8 %v1260
        %v1262 = vlaneseq
        %v1263 = vshrl.u32 %v1262, 7
        %v1264 = vsub.s32 %v1261, %v1263
        %v1265 = vrot.slane %v1251, %v1264
        %v1266 = vcombine.high %v1258, %v1258
        %v1267 = vcombine.high %v1265, %v1265
        %v1268 = vlaneseq
        %v1269 = vshrl.u32 %v1268, 7
        %v1270 = vsub.s32 0, %v1269
        %v1271 = vrot.slane %v1258, %v1270
        %v1272 = vlaneseq
        %v1273 = vshrl.u32 %v1272, 7
        %v1274 = vsub.s32 0, %v1273
        %v1275 = vrot.slane %v1265, %v1274
        %v1276 = vlaneseq
        %v1277 = vshrl.u32 %v1276, 7
        %v1278 = vsub.s32 0, %v1277
        %v1279 = vrot.slane %v1266, %v1278
        %v1280 = vlaneseq
        %v1281 = vshrl.u32 %v1280, 7
        %v1282 = vsub.s32 0, %v1281
        %v1283 = vrot.slane %v1267, %v1282
        %1284 = vrot.lane.b32.xlu0 %v1271, 16
        %v1285 = vpop.permute.xlu0 %1284
        %1286 = vrot.lane.b32.xlu0 %v1275, 16
        %v1287 = vpop.permute.xlu0 %1286
        %1288 = vrot.lane.b32.xlu0 %v1279, 16
        %v1289 = vpop.permute.xlu0 %1288
        %1290 = vrot.lane.b32.xlu0 %v1283, 16
        %v1291 = vpop.permute.xlu0 %1290
        %1296 = vst.msk [vmem:[#allocation3 + $0xf] sm:$0x1] %vm449, %v1285
        %1297 = vst.msk [vmem:[#allocation3 + $0x1f] sm:$0x1] %vm449, %v1287
        %1298 = vst.msk [vmem:[#allocation3 + $0x2f] sm:$0x1] %vm449, %v1289
        %1299 = vst.msk [vmem:[#allocation3 + $0x3f] sm:$0x1] %vm449, %v1291
        %v1300 = vld [vmem:[#allocation3] sm:$0xff]
        %v1301 = vld [vmem:[#allocation3 + $0x8] sm:$0xff]
        %v1302 = vld [vmem:[#allocation3 + $0x10] sm:$0xff]
        %v1303 = vld [vmem:[#allocation3 + $0x18] sm:$0xff]
        %v1304 = vld [vmem:[#allocation3 + $0x20] sm:$0xff]
        %v1305 = vld [vmem:[#allocation3 + $0x28] sm:$0xff]
        %v1306 = vld [vmem:[#allocation3 + $0x30] sm:$0xff]
        %v1307 = vld [vmem:[#allocation3 + $0x38] sm:$0xff]
        %v1308 = vld [vmem:[#allocation9] sm:$0xff]
        %v1309 = vld [vmem:[#allocation9 + $0x8] sm:$0xff]
        %vm1310 = vcmask 130048
        %v1312 = vsel %vm1310, %v1300, 0
        %v1315 = vsel %vm1310, %v1301, 0
        %v1318 = vsel %vm1310, %v1302, 0
        %v1321 = vsel %vm1310, %v1303, 0
        %v1324 = vsel %vm1310, %v1304, 0
        %v1327 = vsel %vm1310, %v1305, 0
        %v1330 = vsel %vm1310, %v1306, 0
        %v1333 = vsel %vm1310, %v1307, 0
        %1335 = vmatprep.subr.mxu0 0.0
        %1336 = vmatpush1.msra.mxu0 %v1308
        %1337 = vmatprep.subr.mxu0 0.0
        %1338 = vmatpush1.msra.mxu0 %v1309
        %1339 = vmatprep.subr.mxu0 0.0
        %1340 = vmatpush1.msra.mxu0 0.0
        %1341 = vmatprep.subr.mxu0 0.0
        %1342 = vmatpush1.msra.mxu0 0.0
        %1343 = vmatprep.subr.mxu0 0.0
        %1344 = vmatpush1.msra.mxu0 0.0
        %1345 = vmatprep.subr.mxu0 0.0
        %1346 = vmatpush1.msra.mxu0 0.0
        %1347 = vmatprep.subr.mxu0 0.0
        %1348 = vmatpush1.msra.mxu0 0.0
        %1349 = vmatprep.subr.mxu0 0.0
        %1350 = vmatpush1.msra.mxu0 0.0
        %1351 = vmatprep.subr.mxu0 0.0
        %1352 = vmatpush1.msra.mxu0 0.0
        %1353 = vmatprep.subr.mxu0 0.0
        %1354 = vmatpush1.msra.mxu0 0.0
        %1355 = vmatprep.subr.mxu0 0.0
        %1356 = vmatpush1.msra.mxu0 0.0
        %1357 = vmatprep.subr.mxu0 0.0
        %1358 = vmatpush1.msra.mxu0 0.0
        %1359 = vmatprep.subr.mxu0 0.0
        %1360 = vmatpush1.msra.mxu0 0.0
        %1361 = vmatprep.subr.mxu0 0.0
        %1362 = vmatpush1.msra.mxu0 0.0
        %1363 = vmatprep.subr.mxu0 0.0
        %1364 = vmatpush1.msra.mxu0 0.0
        %1365 = vmatprep.subr.mxu0 0.0
        %1366 = vmatpush1.msra.mxu0 0.0
        %1367 = vmatprep.subr.mxu0 0.0
        %1368 = vmatpush1.msra.mxu0 0.0
        %1369 = vmatprep.subr.mxu0 0.0
        %1370 = vmatpush1.msra.mxu0 0.0
        %1371 = vmatprep.subr.mxu0 0.0
        %1372 = vmatpush1.msra.mxu0 0.0
        %1373 = vmatprep.subr.mxu0 0.0
        %1374 = vmatpush1.msra.mxu0 0.0
        %1375 = vmatprep.subr.mxu0 0.0
        %1376 = vmatpush1.msra.mxu0 0.0
        %1377 = vmatprep.subr.mxu0 0.0
        %1378 = vmatpush1.msra.mxu0 0.0
        %1379 = vmatprep.subr.mxu0 0.0
        %1380 = vmatpush1.msra.mxu0 0.0
        %1381 = vmatprep.subr.mxu0 0.0
        %1382 = vmatpush1.msra.mxu0 0.0
        %1383 = vmatprep.subr.mxu0 0.0
        %1384 = vmatpush1.msra.mxu0 0.0
        %1385 = vmatprep.subr.mxu0 0.0
        %1386 = vmatpush1.msra.mxu0 0.0
        %1387 = vmatprep.subr.mxu0 0.0
        %1388 = vmatpush1.msra.mxu0 0.0
        %1389 = vmatprep.subr.mxu0 0.0
        %1390 = vmatpush1.msra.mxu0 0.0
        %1391 = vmatprep.subr.mxu0 0.0
        %1392 = vmatpush1.msra.mxu0 0.0
        %1393 = vmatprep.subr.mxu0 0.0
        %1394 = vmatpush1.msra.mxu0 0.0
        %1395 = vmatprep.subr.mxu0 0.0
        %1396 = vmatpush1.msra.mxu0 0.0
        %1397 = vmatprep.subr.mxu0 0.0
        %1398 = vmatpush1.msra.mxu0 0.0
        %1399 = vmatprep.mubr.f32.mxu0 0.0
        %1400 = vmatmul.mubr.f32.gmra.mrb[0].mxu0 %v1312
        %v1401 = vpop.f32.mrb[0].mxu0
        %v1402 = vadd.f32 0.0, %v1401
        %v1403 = vpop.f32.mrb[0].mxu0
        %1404 = vmatprep.mubr.f32.mxu0 0.0
        %1405 = vmatmul.mubr.f32.gmra.mrb[0].mxu0 %v1315
        %v1406 = vpop.f32.mrb[0].mxu0
        %v1407 = vadd.f32 0.0, %v1406
        %v1408 = vpop.f32.mrb[0].mxu0
        %1409 = vmatprep.mubr.f32.mxu0 0.0
        %1410 = vmatmul.mubr.f32.gmra.mrb[0].mxu0 %v1318
        %v1411 = vpop.f32.mrb[0].mxu0
        %v1412 = vadd.f32 0.0, %v1411
        %v1413 = vpop.f32.mrb[0].mxu0
        %1414 = vmatprep.mubr.f32.mxu0 0.0
        %1415 = vmatmul.mubr.f32.gmra.mrb[0].mxu0 %v1321
        %v1416 = vpop.f32.mrb[0].mxu0
        %v1417 = vadd.f32 0.0, %v1416
        %v1418 = vpop.f32.mrb[0].mxu0
        %1419 = vmatprep.mubr.f32.mxu0 0.0
        %1420 = vmatmul.mubr.f32.gmra.mrb[0].mxu0 %v1324
        %v1421 = vpop.f32.mrb[0].mxu0
        %v1422 = vadd.f32 0.0, %v1421
        %v1423 = vpop.f32.mrb[0].mxu0
        %1424 = vmatprep.mubr.f32.mxu0 0.0
        %1425 = vmatmul.mubr.f32.gmra.mrb[0].mxu0 %v1327
        %v1426 = vpop.f32.mrb[0].mxu0
        %v1427 = vadd.f32 0.0, %v1426
        %v1428 = vpop.f32.mrb[0].mxu0
        %1429 = vmatprep.mubr.f32.mxu0 0.0
        %1430 = vmatmul.mubr.f32.gmra.mrb[0].mxu0 %v1330
        %v1431 = vpop.f32.mrb[0].mxu0
        %v1432 = vadd.f32 0.0, %v1431
        %v1433 = vpop.f32.mrb[0].mxu0
        %1434 = vmatprep.mubr.f32.mxu0 0.0
        %1435 = vmatmul.mubr.f32.gmra.mrb[0].mxu0 %v1333
        %v1436 = vpop.f32.mrb[0].mxu0
        %v1437 = vadd.f32 0.0, %v1436
        %v1438 = vpop.f32.mrb[0].mxu0
        %1439 = vdwg.mxu0
        %v1440 = vld [vmem:[#allocation7] sm:$0xff]
        %v1441 = vld [vmem:[#allocation7 + $0x8] sm:$0xff]
        %v1442 = vld [vmem:[#allocation7 + $0x10] sm:$0xff]
        %v1443 = vld [vmem:[#allocation7 + $0x18] sm:$0xff]
        %v1445 = vsel %vm1310, %v1440, 0
        %v1448 = vsel %vm1310, %v1441, 0
        %v1451 = vsel %vm1310, %v1442, 0
        %v1454 = vsel %vm1310, %v1443, 0
        %1456 = vmatprep.subr.mxu0 0.0
        %1457 = vmatpush1.msra.mxu0 %v1402
        %1458 = vmatprep.subr.mxu0 0.0
        %1459 = vmatpush1.msra.mxu0 %v1407
        %1460 = vmatprep.subr.mxu0 0.0
        %1461 = vmatpush1.msra.mxu0 0.0
        %1462 = vmatprep.subr.mxu0 0.0
        %1463 = vmatpush1.msra.mxu0 0.0
        %1464 = vmatprep.subr.mxu0 0.0
        %1465 = vmatpush1.msra.mxu0 0.0
        %1466 = vmatprep.subr.mxu0 0.0
        %1467 = vmatpush1.msra.mxu0 0.0
        %1468 = vmatprep.subr.mxu0 0.0
        %1469 = vmatpush1.msra.mxu0 0.0
        %1470 = vmatprep.subr.mxu0 0.0
        %1471 = vmatpush1.msra.mxu0 0.0
        %1472 = vmatprep.subr.mxu0 0.0
        %1473 = vmatpush1.msra.mxu0 0.0
        %1474 = vmatprep.subr.mxu0 0.0
        %1475 = vmatpush1.msra.mxu0 0.0
        %1476 = vmatprep.subr.mxu0 0.0
        %1477 = vmatpush1.msra.mxu0 0.0
        %1478 = vmatprep.subr.mxu0 0.0
        %1479 = vmatpush1.msra.mxu0 0.0
        %1480 = vmatprep.subr.mxu0 0.0
        %1481 = vmatpush1.msra.mxu0 0.0
        %1482 = vmatprep.subr.mxu0 0.0
        %1483 = vmatpush1.msra.mxu0 0.0
        %1484 = vmatprep.subr.mxu0 0.0
        %1485 = vmatpush1.msra.mxu0 0.0
        %1486 = vmatprep.subr.mxu0 0.0
        %1487 = vmatpush1.msra.mxu0 0.0
        %1488 = vmatprep.subr.mxu0 0.0
        %1489 = vmatpush1.msra.mxu0 0.0
        %1490 = vmatprep.subr.mxu0 0.0
        %1491 = vmatpush1.msra.mxu0 0.0
        %1492 = vmatprep.subr.mxu0 0.0
        %1493 = vmatpush1.msra.mxu0 0.0
        %1494 = vmatprep.subr.mxu0 0.0
        %1495 = vmatpush1.msra.mxu0 0.0
        %1496 = vmatprep.subr.mxu0 0.0
        %1497 = vmatpush1.msra.mxu0 0.0
        %1498 = vmatprep.subr.mxu0 0.0
        %1499 = vmatpush1.msra.mxu0 0.0
        %1500 = vmatprep.subr.mxu0 0.0
        %1501 = vmatpush1.msra.mxu0 0.0
        %1502 = vmatprep.subr.mxu0 0.0
        %1503 = vmatpush1.msra.mxu0 0.0
        %1504 = vmatprep.subr.mxu0 0.0
        %1505 = vmatpush1.msra.mxu0 0.0
        %1506 = vmatprep.subr.mxu0 0.0
        %1507 = vmatpush1.msra.mxu0 0.0
        %1508 = vmatprep.subr.mxu0 0.0
        %1509 = vmatpush1.msra.mxu0 0.0
        %1510 = vmatprep.subr.mxu0 0.0
        %1511 = vmatpush1.msra.mxu0 0.0
        %1512 = vmatprep.subr.mxu0 0.0
        %1513 = vmatpush1.msra.mxu0 0.0
        %1514 = vmatprep.subr.mxu0 0.0
        %1515 = vmatpush1.msra.mxu0 0.0
        %1516 = vmatprep.subr.mxu0 0.0
        %1517 = vmatpush1.msra.mxu0 0.0
        %1518 = vmatprep.subr.mxu0 0.0
        %1519 = vmatpush1.msra.mxu0 0.0
        %1520 = vmatprep.mubr.f32.mxu0 0.0
        %1521 = vmatmul.mubr.f32.gmra.mrb[0].mxu0 %v1445
        %v1522 = vpop.f32.mrb[0].mxu0
        %v1523 = vadd.f32 0.0, %v1522
        %v1524 = vpop.f32.mrb[0].mxu0
        %1525 = vmatprep.mubr.f32.mxu0 0.0
        %1526 = vmatmul.mubr.f32.gmra.mrb[0].mxu0 %v1448
        %v1527 = vpop.f32.mrb[0].mxu0
        %v1528 = vadd.f32 0.0, %v1527
        %v1529 = vpop.f32.mrb[0].mxu0
        %1530 = vmatprep.mubr.f32.mxu0 0.0
        %1531 = vmatmul.mubr.f32.gmra.mrb[0].mxu0 %v1451
        %v1532 = vpop.f32.mrb[0].mxu0
        %v1533 = vadd.f32 0.0, %v1532
        %v1534 = vpop.f32.mrb[0].mxu0
        %1535 = vmatprep.mubr.f32.mxu0 0.0
        %1536 = vmatmul.mubr.f32.gmra.mrb[0].mxu0 %v1454
        %v1537 = vpop.f32.mrb[0].mxu0
        %v1538 = vadd.f32 0.0, %v1537
        %v1539 = vpop.f32.mrb[0].mxu0
        %1540 = vdwg.mxu0
        %1541 = vmatprep.subr.mxu0 0.0
        %1542 = vmatpush1.msra.mxu0 %v1412
        %1543 = vmatprep.subr.mxu0 0.0
        %1544 = vmatpush1.msra.mxu0 %v1417
        %1545 = vmatprep.subr.mxu0 0.0
        %1546 = vmatpush1.msra.mxu0 0.0
        %1547 = vmatprep.subr.mxu0 0.0
        %1548 = vmatpush1.msra.mxu0 0.0
        %1549 = vmatprep.subr.mxu0 0.0
        %1550 = vmatpush1.msra.mxu0 0.0
        %1551 = vmatprep.subr.mxu0 0.0
        %1552 = vmatpush1.msra.mxu0 0.0
        %1553 = vmatprep.subr.mxu0 0.0
        %1554 = vmatpush1.msra.mxu0 0.0
        %1555 = vmatprep.subr.mxu0 0.0
        %1556 = vmatpush1.msra.mxu0 0.0
        %1557 = vmatprep.subr.mxu0 0.0
        %1558 = vmatpush1.msra.mxu0 0.0
        %1559 = vmatprep.subr.mxu0 0.0
        %1560 = vmatpush1.msra.mxu0 0.0
        %1561 = vmatprep.subr.mxu0 0.0
        %1562 = vmatpush1.msra.mxu0 0.0
        %1563 = vmatprep.subr.mxu0 0.0
        %1564 = vmatpush1.msra.mxu0 0.0
        %1565 = vmatprep.subr.mxu0 0.0
        %1566 = vmatpush1.msra.mxu0 0.0
        %1567 = vmatprep.subr.mxu0 0.0
        %1568 = vmatpush1.msra.mxu0 0.0
        %1569 = vmatprep.subr.mxu0 0.0
        %1570 = vmatpush1.msra.mxu0 0.0
        %1571 = vmatprep.subr.mxu0 0.0
        %1572 = vmatpush1.msra.mxu0 0.0
        %1573 = vmatprep.subr.mxu0 0.0
        %1574 = vmatpush1.msra.mxu0 0.0
        %1575 = vmatprep.subr.mxu0 0.0
        %1576 = vmatpush1.msra.mxu0 0.0
        %1577 = vmatprep.subr.mxu0 0.0
        %1578 = vmatpush1.msra.mxu0 0.0
        %1579 = vmatprep.subr.mxu0 0.0
        %1580 = vmatpush1.msra.mxu0 0.0
        %1581 = vmatprep.subr.mxu0 0.0
        %1582 = vmatpush1.msra.mxu0 0.0
        %1583 = vmatprep.subr.mxu0 0.0
        %1584 = vmatpush1.msra.mxu0 0.0
        %1585 = vmatprep.subr.mxu0 0.0
        %1586 = vmatpush1.msra.mxu0 0.0
        %1587 = vmatprep.subr.mxu0 0.0
        %1588 = vmatpush1.msra.mxu0 0.0
        %1589 = vmatprep.subr.mxu0 0.0
        %1590 = vmatpush1.msra.mxu0 0.0
        %1591 = vmatprep.subr.mxu0 0.0
        %1592 = vmatpush1.msra.mxu0 0.0
        %1593 = vmatprep.subr.mxu0 0.0
        %1594 = vmatpush1.msra.mxu0 0.0
        %1595 = vmatprep.subr.mxu0 0.0
        %1596 = vmatpush1.msra.mxu0 0.0
        %1597 = vmatprep.subr.mxu0 0.0
        %1598 = vmatpush1.msra.mxu0 0.0
        %1599 = vmatprep.subr.mxu0 0.0
        %1600 = vmatpush1.msra.mxu0 0.0
        %1601 = vmatprep.subr.mxu0 0.0
        %1602 = vmatpush1.msra.mxu0 0.0
        %1603 = vmatprep.subr.mxu0 0.0
        %1604 = vmatpush1.msra.mxu0 0.0
        %1605 = vmatprep.mubr.f32.mxu0 0.0
        %1606 = vmatmul.mubr.f32.gmra.mrb[0].mxu0 %v1445
        %v1607 = vpop.f32.mrb[0].mxu0
        %v1608 = vadd.f32 0.0, %v1607
        %v1609 = vpop.f32.mrb[0].mxu0
        %1610 = vmatprep.mubr.f32.mxu0 0.0
        %1611 = vmatmul.mubr.f32.gmra.mrb[0].mxu0 %v1448
        %v1612 = vpop.f32.mrb[0].mxu0
        %v1613 = vadd.f32 0.0, %v1612
        %v1614 = vpop.f32.mrb[0].mxu0
        %1615 = vmatprep.mubr.f32.mxu0 0.0
        %1616 = vmatmul.mubr.f32.gmra.mrb[0].mxu0 %v1451
        %v1617 = vpop.f32.mrb[0].mxu0
        %v1618 = vadd.f32 0.0, %v1617
        %v1619 = vpop.f32.mrb[0].mxu0
        %1620 = vmatprep.mubr.f32.mxu0 0.0
        %1621 = vmatmul.mubr.f32.gmra.mrb[0].mxu0 %v1454
        %v1622 = vpop.f32.mrb[0].mxu0
        %v1623 = vadd.f32 0.0, %v1622
        %v1624 = vpop.f32.mrb[0].mxu0
        %1625 = vdwg.mxu0
        %1626 = vmatprep.subr.mxu0 0.0
        %1627 = vmatpush1.msra.mxu0 %v1422
        %1628 = vmatprep.subr.mxu0 0.0
        %1629 = vmatpush1.msra.mxu0 %v1427
        %1630 = vmatprep.subr.mxu0 0.0
        %1631 = vmatpush1.msra.mxu0 0.0
        %1632 = vmatprep.subr.mxu0 0.0
        %1633 = vmatpush1.msra.mxu0 0.0
        %1634 = vmatprep.subr.mxu0 0.0
        %1635 = vmatpush1.msra.mxu0 0.0
        %1636 = vmatprep.subr.mxu0 0.0
        %1637 = vmatpush1.msra.mxu0 0.0
        %1638 = vmatprep.subr.mxu0 0.0
        %1639 = vmatpush1.msra.mxu0 0.0
        %1640 = vmatprep.subr.mxu0 0.0
        %1641 = vmatpush1.msra.mxu0 0.0
        %1642 = vmatprep.subr.mxu0 0.0
        %1643 = vmatpush1.msra.mxu0 0.0
        %1644 = vmatprep.subr.mxu0 0.0
        %1645 = vmatpush1.msra.mxu0 0.0
        %1646 = vmatprep.subr.mxu0 0.0
        %1647 = vmatpush1.msra.mxu0 0.0
        %1648 = vmatprep.subr.mxu0 0.0
        %1649 = vmatpush1.msra.mxu0 0.0
        %1650 = vmatprep.subr.mxu0 0.0
        %1651 = vmatpush1.msra.mxu0 0.0
        %1652 = vmatprep.subr.mxu0 0.0
        %1653 = vmatpush1.msra.mxu0 0.0
        %1654 = vmatprep.subr.mxu0 0.0
        %1655 = vmatpush1.msra.mxu0 0.0
        %1656 = vmatprep.subr.mxu0 0.0
        %1657 = vmatpush1.msra.mxu0 0.0
        %1658 = vmatprep.subr.mxu0 0.0
        %1659 = vmatpush1.msra.mxu0 0.0
        %1660 = vmatprep.subr.mxu0 0.0
        %1661 = vmatpush1.msra.mxu0 0.0
        %1662 = vmatprep.subr.mxu0 0.0
        %1663 = vmatpush1.msra.mxu0 0.0
        %1664 = vmatprep.subr.mxu0 0.0
        %1665 = vmatpush1.msra.mxu0 0.0
        %1666 = vmatprep.subr.mxu0 0.0
        %1667 = vmatpush1.msra.mxu0 0.0
        %1668 = vmatprep.subr.mxu0 0.0
        %1669 = vmatpush1.msra.mxu0 0.0
        %1670 = vmatprep.subr.mxu0 0.0
        %1671 = vmatpush1.msra.mxu0 0.0
        %1672 = vmatprep.subr.mxu0 0.0
        %1673 = vmatpush1.msra.mxu0 0.0
        %1674 = vmatprep.subr.mxu0 0.0
        %1675 = vmatpush1.msra.mxu0 0.0
        %1676 = vmatprep.subr.mxu0 0.0
        %1677 = vmatpush1.msra.mxu0 0.0
        %1678 = vmatprep.subr.mxu0 0.0
        %1679 = vmatpush1.msra.mxu0 0.0
        %1680 = vmatprep.subr.mxu0 0.0
        %1681 = vmatpush1.msra.mxu0 0.0
        %1682 = vmatprep.subr.mxu0 0.0
        %1683 = vmatpush1.msra.mxu0 0.0
        %1684 = vmatprep.subr.mxu0 0.0
        %1685 = vmatpush1.msra.mxu0 0.0
        %1686 = vmatprep.subr.mxu0 0.0
        %1687 = vmatpush1.msra.mxu0 0.0
        %1688 = vmatprep.subr.mxu0 0.0
        %1689 = vmatpush1.msra.mxu0 0.0
        %1690 = vmatprep.mubr.f32.mxu0 0.0
        %1691 = vmatmul.mubr.f32.gmra.mrb[0].mxu0 %v1445
        %v1692 = vpop.f32.mrb[0].mxu0
        %v1693 = vadd.f32 0.0, %v1692
        %v1694 = vpop.f32.mrb[0].mxu0
        %1695 = vmatprep.mubr.f32.mxu0 0.0
        %1696 = vmatmul.mubr.f32.gmra.mrb[0].mxu0 %v1448
        %v1697 = vpop.f32.mrb[0].mxu0
        %v1698 = vadd.f32 0.0, %v1697
        %v1699 = vpop.f32.mrb[0].mxu0
        %1700 = vmatprep.mubr.f32.mxu0 0.0
        %1701 = vmatmul.mubr.f32.gmra.mrb[0].mxu0 %v1451
        %v1702 = vpop.f32.mrb[0].mxu0
        %v1703 = vadd.f32 0.0, %v1702
        %v1704 = vpop.f32.mrb[0].mxu0
        %1705 = vmatprep.mubr.f32.mxu0 0.0
        %1706 = vmatmul.mubr.f32.gmra.mrb[0].mxu0 %v1454
        %v1707 = vpop.f32.mrb[0].mxu0
        %v1708 = vadd.f32 0.0, %v1707
        %v1709 = vpop.f32.mrb[0].mxu0
        %1710 = vdwg.mxu0
        %1711 = vmatprep.subr.mxu0 0.0
        %1712 = vmatpush1.msra.mxu0 %v1432
        %1713 = vmatprep.subr.mxu0 0.0
        %1714 = vmatpush1.msra.mxu0 %v1437
        %1715 = vmatprep.subr.mxu0 0.0
        %1716 = vmatpush1.msra.mxu0 0.0
        %1717 = vmatprep.subr.mxu0 0.0
        %1718 = vmatpush1.msra.mxu0 0.0
        %1719 = vmatprep.subr.mxu0 0.0
        %1720 = vmatpush1.msra.mxu0 0.0
        %1721 = vmatprep.subr.mxu0 0.0
        %1722 = vmatpush1.msra.mxu0 0.0
        %1723 = vmatprep.subr.mxu0 0.0
        %1724 = vmatpush1.msra.mxu0 0.0
        %1725 = vmatprep.subr.mxu0 0.0
        %1726 = vmatpush1.msra.mxu0 0.0
        %1727 = vmatprep.subr.mxu0 0.0
        %1728 = vmatpush1.msra.mxu0 0.0
        %1729 = vmatprep.subr.mxu0 0.0
        %1730 = vmatpush1.msra.mxu0 0.0
        %1731 = vmatprep.subr.mxu0 0.0
        %1732 = vmatpush1.msra.mxu0 0.0
        %1733 = vmatprep.subr.mxu0 0.0
        %1734 = vmatpush1.msra.mxu0 0.0
        %1735 = vmatprep.subr.mxu0 0.0
        %1736 = vmatpush1.msra.mxu0 0.0
        %1737 = vmatprep.subr.mxu0 0.0
        %1738 = vmatpush1.msra.mxu0 0.0
        %1739 = vmatprep.subr.mxu0 0.0
        %1740 = vmatpush1.msra.mxu0 0.0
        %1741 = vmatprep.subr.mxu0 0.0
        %1742 = vmatpush1.msra.mxu0 0.0
        %1743 = vmatprep.subr.mxu0 0.0
        %1744 = vmatpush1.msra.mxu0 0.0
        %1745 = vmatprep.subr.mxu0 0.0
        %1746 = vmatpush1.msra.mxu0 0.0
        %1747 = vmatprep.subr.mxu0 0.0
        %1748 = vmatpush1.msra.mxu0 0.0
        %1749 = vmatprep.subr.mxu0 0.0
        %1750 = vmatpush1.msra.mxu0 0.0
        %1751 = vmatprep.subr.mxu0 0.0
        %1752 = vmatpush1.msra.mxu0 0.0
        %1753 = vmatprep.subr.mxu0 0.0
        %1754 = vmatpush1.msra.mxu0 0.0
        %1755 = vmatprep.subr.mxu0 0.0
        %1756 = vmatpush1.msra.mxu0 0.0
        %1757 = vmatprep.subr.mxu0 0.0
        %1758 = vmatpush1.msra.mxu0 0.0
        %1759 = vmatprep.subr.mxu0 0.0
        %1760 = vmatpush1.msra.mxu0 0.0
        %1761 = vmatprep.subr.mxu0 0.0
        %1762 = vmatpush1.msra.mxu0 0.0
        %1763 = vmatprep.subr.mxu0 0.0
        %1764 = vmatpush1.msra.mxu0 0.0
        %1765 = vmatprep.subr.mxu0 0.0
        %1766 = vmatpush1.msra.mxu0 0.0
        %1767 = vmatprep.subr.mxu0 0.0
        %1768 = vmatpush1.msra.mxu0 0.0
        %1769 = vmatprep.subr.mxu0 0.0
        %1770 = vmatpush1.msra.mxu0 0.0
        %1771 = vmatprep.subr.mxu0 0.0
        %1772 = vmatpush1.msra.mxu0 0.0
        %1773 = vmatprep.subr.mxu0 0.0
        %1774 = vmatpush1.msra.mxu0 0.0
        %1775 = vmatprep.mubr.f32.mxu0 0.0
        %1776 = vmatmul.mubr.f32.gmra.mrb[0].mxu0 %v1445
        %v1777 = vpop.f32.mrb[0].mxu0
        %v1778 = vadd.f32 0.0, %v1777
        %v1779 = vpop.f32.mrb[0].mxu0
        %1780 = vmatprep.mubr.f32.mxu0 0.0
        %1781 = vmatmul.mubr.f32.gmra.mrb[0].mxu0 %v1448
        %v1782 = vpop.f32.mrb[0].mxu0
        %v1783 = vadd.f32 0.0, %v1782
        %v1784 = vpop.f32.mrb[0].mxu0
        %1785 = vmatprep.mubr.f32.mxu0 0.0
        %1786 = vmatmul.mubr.f32.gmra.mrb[0].mxu0 %v1451
        %v1787 = vpop.f32.mrb[0].mxu0
        %v1788 = vadd.f32 0.0, %v1787
        %v1789 = vpop.f32.mrb[0].mxu0
        %1790 = vmatprep.mubr.f32.mxu0 0.0
        %1791 = vmatmul.mubr.f32.gmra.mrb[0].mxu0 %v1454
        %v1792 = vpop.f32.mrb[0].mxu0
        %v1793 = vadd.f32 0.0, %v1792
        %v1794 = vpop.f32.mrb[0].mxu0
        %1795 = vdwg.mxu0
        %vm1796 = vcmask 261120
        %1797 = vst.msk [vmem:[%s322] sm:$0xff] %vm1796, %v1523
        %1798 = vst.msk [vmem:[%s322 + $0x8] sm:$0xff] %vm1796, %v1528
        %1799 = vst.msk [vmem:[%s322 + $0x10] sm:$0xff] %vm1796, %v1533
        %1800 = vst.msk [vmem:[%s322 + $0x18] sm:$0xff] %vm1796, %v1538
        %1801 = vst.msk [vmem:[%s322 + $0x20] sm:$0xff] %vm1796, %v1608
        %1802 = vst.msk [vmem:[%s322 + $0x28] sm:$0xff] %vm1796, %v1613
        %1803 = vst.msk [vmem:[%s322 + $0x30] sm:$0xff] %vm1796, %v1618
        %1804 = vst.msk [vmem:[%s322 + $0x38] sm:$0xff] %vm1796, %v1623
        %1805 = vst.msk [vmem:[%s322 + $0x40] sm:$0xff] %vm1796, %v1693
        %1806 = vst.msk [vmem:[%s322 + $0x48] sm:$0xff] %vm1796, %v1698
        %1807 = vst.msk [vmem:[%s322 + $0x50] sm:$0xff] %vm1796, %v1703
        %1808 = vst.msk [vmem:[%s322 + $0x58] sm:$0xff] %vm1796, %v1708
        %1809 = vst.msk [vmem:[%s322 + $0x60] sm:$0xff] %vm1796, %v1778
        %1810 = vst.msk [vmem:[%s322 + $0x68] sm:$0xff] %vm1796, %v1783
        %1811 = vst.msk [vmem:[%s322 + $0x70] sm:$0xff] %vm1796, %v1788
        %1812 = vst.msk [vmem:[%s322 + $0x78] sm:$0xff] %vm1796, %v1793
        %s1813 = sand.u32 %s166, 1
        %s1814 = scalar_lea.sflag [#allocation6], %s1813
        %s1815 = sand.u32 %s166, 1
        %s1816 = smul.addr %s1815, 128
        %s1817 = scalar_lea.vmem [#allocation13], %s1816
        // Predicated region
        $region61: #{tpu_custom_call.1} parent=39 // pred_check
          %p1818 = pneg %p176
        $region62: #{tpu_custom_call.1} parent=39 // pred_check_branch
          %1820 = sbr.rel (%p1818) target = $region64
        $region63: #{tpu_custom_call.1} parent=39 // pred_region
          %s1821 = smul.u32 4, %s29
          %s1823 = ssub.s32 2048, 2048
          %1824 = vsyncadd %s1814, %s1823
          %s1825 = smul.addr %s1821, 4
          %s1826 = smul.addr %s28, 16
          %s1827 = sadd.s32 %s1825, %s1826
          %s1828 = smul.addr %s1827, 128
          %s1829 = scalar_lea.hbm %s5, %s1828
          %s1830 = sshll.u32 %s1817, 4
          %s1831 = int_to_ptr.vmem [resolvable:$true] %s1830
          %1836 = dma.vmem_to_hbm [thread:$0]  %s1831, 2048, %s1829, %s1814, 128, 128, 8
        $region64: #{tpu_custom_call.1} parent=39 // pred_fallthru
          _
      $region40: #{tpu_custom_call.1} parent=5 // pred_fallthru
        _
      %p1837 = scmp.le.s32.totalorder 2, %s19
      // Predicated region
      $region65: #{tpu_custom_call.1} parent=5 // pred_check
        %p1838 = pneg %p1837
      $region66: #{tpu_custom_call.1} parent=5 // pred_check_branch
        %1840 = sbr.rel (%p1838) target = $region68
      $region67: #{tpu_custom_call.1} parent=5 // pred_region
        %s1841 = ssub.s32 %s19, 2
        // Predicated region
        $region69: #{tpu_custom_call.1} parent=67 // pred_check
          %p1842 = pneg %p182
        $region70: #{tpu_custom_call.1} parent=67 // pred_check_branch
          %1844 = sbr.rel (%p1842) target = $region72
        $region71: #{tpu_custom_call.1} parent=67 // pred_region
          %s1845 = sand.u32 %s167, 1
          %s1846 = scalar_lea.sflag [#allocation6], %s1845
          %s1847 = sand.u32 %s167, 1
          %s1848 = smul.addr %s1847, 128
          %s1849 = scalar_lea.vmem [#allocation13], %s1848
          %1850 = dma.done %s1846, 2048
        $region72: #{tpu_custom_call.1} parent=67 // pred_fallthru
          _
      $region68: #{tpu_custom_call.1} parent=5 // pred_fallthru
        _
    $region6: #{tpu_custom_call.1} parent=1 // loop_footer
      %s23 = sadd.s32 1, %s19
    $region7: #{tpu_custom_call.1} parent=1 // loop_footer_branch
      %18 = sbr.rel target = $region3
    $region8: #{tpu_custom_call.1} parent=1 // loop_exit
      _
    %1851 = vsyncpa [#allocation5], 1
    %s1852 = scalar_lea.sflag [#allocation5], 1
    %1853 = vsyncpa %s1852, 1
    %1854 = vsyncpa [#allocation8], 1
    %1855 = vsyncpa [#allocation11], 1
    %1856 = vsyncpa [#allocation6], 1
    %s1857 = scalar_lea.sflag [#allocation6], 1
    %1858 = vsyncpa %s1857, 1

</llo_original>
